<compile_context>
chip_gen: v5e
topology: v5e:2x2
jax: 0.10.0
libtpu: 0.0.40
codegen_flags: <defaults>
</compile_context>

<pallas_src>
import functools

import jax
import jax.numpy as jnp
from jax.experimental import pallas as pl
from jax.experimental.pallas import tpu as pltpu


def _fused_kernel(xb_ref, mrow_ref, mrowt_ref, cnt_ref,
                  w_all_ref, bc_ref, wc_ref, blkmask_ref, shift_ref,
                  w_kv_ref, b_kv_ref, hm_kv_ref, seg_ref, hexp_ref,
                  gain_ref, obias_ref, o_ref, *, S, Dv, C, P, num_proj):
    """Fused SeqToImageStart forward for one batch row.

    xb   : (nH*S, Dv)  x replicated per head along sublanes (wrapper-tiled)
    mrow : (1, S)      mask row;  mrowt: (1, nH*S) mask tiled per head
    cnt  : (1, 1)      valid count
    Static 0/1 matrices (blkmask, shift, hm_kv, seg, hexp) realize the
    query reshape, head masking and per-head segment reductions on the MXU.
    """
    f32 = jnp.float32

    xb = xb_ref[0]            # (nH*S, Dv)
    x = xb[:S, :]             # (S, Dv)
    mrow = mrow_ref[0]        # (1, S)
    mrowt = mrowt_ref[0]      # (1, nH*S)
    cnt = cnt_ref[0]          # (1, 1)

    inv_cnt = 1.0 / cnt
    inv_sqrt_cnt = jax.lax.rsqrt(cnt)          # EUP

    # ---- masked pooling on the MXU (all P rows identical) ----
    mrow_b = jnp.broadcast_to(mrow, (P, S))                            # (P, S)
    totals_b = jnp.dot(mrow_b, x, preferred_element_type=f32)          # (P, Dv)
    avgs_b = totals_b * inv_cnt                                        # (P, Dv)

    # ---- merged feat/count projections: [query | output-residual] ----
    ybig = (jnp.dot(avgs_b, w_all_ref[:Dv, :], preferred_element_type=f32)
            + jnp.dot(totals_b, w_all_ref[Dv:, :], preferred_element_type=f32)
            + bc_ref[...] + cnt * wc_ref[...])                          # (P, np*O)
    # per-position lane selection + lane->channel fold (exact 0/1 matmul)
    qe = jnp.dot(ybig * blkmask_ref[...], shift_ref[...],
                 preferred_element_type=f32)                            # (P, np*C)
    q = qe[:, :C]                                                       # (P, C)

    # ---- fused K|V projection, head-replicated and head-masked ----
    kv = (jnp.dot(xb, w_kv_ref[...], preferred_element_type=f32)
          + b_kv_ref[...]) * hm_kv_ref[...]                             # (nH*S, 2C)
    kb = kv[:, :C]                                                      # (nH*S, C)
    vb = kv[:, C:]                                                      # (nH*S, C)

    # ---- all-head attention scores in a single matmul ----
    scores = jax.lax.dot_general(q, kb, (((1,), (1,)), ((), ())),
                                 preferred_element_type=f32)            # (P, nH*S)

    # ---- overall gate: masked mean-pooled raw scores per head ----
    pooled = jnp.dot(scores * mrowt, seg_ref[...],
                     preferred_element_type=f32) * inv_cnt              # (P, nH)
    gate = jax.nn.sigmoid(pooled * gain_ref[...] + obias_ref[...])      # (P, nH)

    # ---- masked softmax per head segment ----
    add_mask = jnp.where(mrowt == 0.0, f32(-1e30), f32(0.0))            # (1, nH*S)
    logits = scores * inv_sqrt_cnt + add_mask
    # Row-global max is constant within each head segment, so it is a valid
    # (exact) softmax shift and avoids a segmented-max relayout.
    m = jnp.max(logits, axis=-1, keepdims=True)                         # (P, 1)
    e = jnp.exp(logits - m)                                             # (P, nH*S)
    denom = jnp.dot(e, seg_ref[...], preferred_element_type=f32)        # (P, nH)

    out = jnp.dot(e, vb, preferred_element_type=f32)                    # (P, C) unnormalized
    scale = jnp.dot(gate / denom, hexp_ref[...],
                    preferred_element_type=f32)                         # (P, C)
    out = out * scale
    if num_proj == 2:
        out = out + qe[:, C:]                                           # feat->output residual
    o_ref[0] = out.astype(o_ref.dtype)


def seq_to_image_start(x, masks, counts, params, *, start_width, start_ch,
                       ch_per_head, use_feat_to_output=True):
    """x: (B, S, seq_size), masks: (B, S) in {0,1}, counts: (B,) -> (B, C, W, W)."""
    f32 = jnp.float32
    B, S, Dv = x.shape
    C, W = start_ch, start_width
    P = W * W
    O = P * C
    dh = ch_per_head
    nH = C // dh
    assert C % dh == 0
    np_ = 2 if use_feat_to_output else 1

    x = x.astype(f32)
    masks_f = masks.astype(f32)

    # Per-batch inputs (head-replicated x so per-head K/V come from one matmul).
    x_big = jnp.tile(x, (1, nH, 1))                       # (B, nH*S, Dv)
    mrow = masks_f.reshape(B, 1, S)
    mrow_t = jnp.tile(masks_f, (1, nH)).reshape(B, 1, nH * S)
    cnt = counts.astype(f32).reshape(B, 1, 1)

    # Merged feat/count projection weights: columns [0:O]=query, [O:2O]=output.
    if use_feat_to_output:
        w_all = jnp.concatenate([params["w_fq"], params["w_fo"]], axis=1)          # (2Dv, 2O)
        bc_all = jnp.concatenate([params["b_fq"], params["b_fo"]]).reshape(1, np_ * O)
        wc_all = jnp.concatenate([params["w_cq"].reshape(-1),
                                  params["w_co"].reshape(-1)]).reshape(1, np_ * O)
    else:
        w_all = params["w_fq"]
        bc_all = params["b_fq"].reshape(1, O)
        wc_all = params["w_cq"].reshape(1, O)
    w_all = w_all.astype(f32)

    # Static selection matrices (built host-side, resident in VMEM).
    o_idx = jnp.arange(np_ * O)
    blkmask = (((o_idx % O) // C)[None, :] == jnp.arange(P)[:, None]).astype(f32)   # (P, np*O)
    c_idx = jnp.arange(np_ * C)
    shift = (((o_idx[:, None] // O) == (c_idx[None, :] // C))
             & ((o_idx[:, None] % C) == (c_idx[None, :] % C))).astype(f32)          # (np*O, np*C)

    w_kv = jnp.concatenate([params["w_k"], params["w_v"]], axis=1).astype(f32)      # (Dv, 2C)
    b_kv = jnp.concatenate([params["b_k"], params["b_v"]]).reshape(1, 2 * C).astype(f32)

    j_idx = jnp.arange(nH * S)
    ch2 = jnp.arange(2 * C)
    hm_kv = ((j_idx[:, None] // S) == ((ch2[None, :] % C) // dh)).astype(f32)       # (nH*S, 2C)
    seg = ((j_idx[:, None] // S) == jnp.arange(nH)[None, :]).astype(f32)            # (nH*S, nH)
    hexp = (jnp.arange(nH)[:, None] == (jnp.arange(C)[None, :] // dh)).astype(f32)  # (nH, C)

    gain = params["gain"].reshape(1, nH).astype(f32)
    obias = params["obias"].reshape(1, nH).astype(f32)

    batch3 = lambda shape: pl.BlockSpec(shape, lambda b: (b, 0, 0))
    res2 = lambda arr: pl.BlockSpec(arr.shape, lambda b: (0, 0))

    inputs = [x_big, mrow, mrow_t, cnt,
              w_all, bc_all, wc_all, blkmask, shift,
              w_kv, b_kv, hm_kv, seg, hexp, gain, obias]
    in_specs = [batch3((1, nH * S, Dv)), batch3((1, 1, S)),
                batch3((1, 1, nH * S)), batch3((1, 1, 1))] + \
               [res2(a) for a in inputs[4:]]

    out = pl.pallas_call(
        functools.partial(_fused_kernel, S=S, Dv=Dv, C=C, P=P, num_proj=np_),
        grid=(B,),
        in_specs=in_specs,
        out_specs=batch3((1, P, C)),
        out_shape=jax.ShapeDtypeStruct((B, P, C), f32),
        compiler_params=pltpu.CompilerParams(dimension_semantics=("parallel",)),
    )(*inputs)

    # seq_to_width: (B, P, C) -> (B, W, W, C) -> (B, C, W, W), wrapper-side.
    return jnp.transpose(out.reshape(B, W, W, C), (0, 3, 1, 2))


def _reference(x, masks, counts, params, *, start_width, start_ch, ch_per_head,
               use_feat_to_output=True):
    B, S, Dv = x.shape
    C, W = start_ch, start_width
    P = W * W
    nH = C // ch_per_head

    x_masked = x * masks[:, :, None]
    counts_e = counts[:, None]
    totals = x_masked.sum(1)
    avgs = totals / counts_e
    feat = jnp.concatenate([avgs, totals], axis=1)

    query = (feat @ params["w_fq"] + params["b_fq"]
             + counts_e @ params["w_cq"]).reshape(B, P, C)
    k = x @ params["w_k"] + params["b_k"]
    v = x @ params["w_v"] + params["b_v"]

    def heads(t):
        return t.reshape(t.shape[0], t.shape[1], nH, -1).transpose(0, 2, 1, 3)

    qh, kh, vh = heads(query), heads(k), heads(v)
    scores = qh @ jnp.swapaxes(kh, -1, -2)                            # (B,nH,P,S)
    scores_div = scores / jnp.sqrt(counts)[:, None, None, None]
    pooled = (scores * masks[:, None, None, :]
              / counts[:, None, None, None]).sum(-1, keepdims=True)
    gate = jax.nn.sigmoid(pooled * params["gain"].reshape(1, nH, 1, 1)
                          + params["obias"].reshape(1, nH, 1, 1))
    add_mask = jnp.where(masks == 0, -jnp.inf, 0.0)[:, None, None, :]
    probs = jax.nn.softmax(scores_div + add_mask, axis=-1)
    h = probs @ vh
    out = (h * gate).transpose(0, 2, 1, 3).reshape(B, P, C)
    if use_feat_to_output:
        out = out + (feat @ params["w_fo"] + params["b_fo"]
                     + counts_e @ params["w_co"]).reshape(B, P, C)
    return jnp.transpose(out.reshape(B, W, W, C), (0, 3, 1, 2))


if __name__ == "__main__":
    # cfg: seq_size=32, start_ch=32, ch_per_head=8 (-> 4 heads), start_width=4,
    #      use_feat_to_output=True; batch=2, sequence length=8.
    B, S = 2, 8
    seq_size, start_ch, ch_per_head, start_width = 32, 32, 8, 4
    use_feat_to_output = True

    Dv, C, W = seq_size, start_ch, start_width
    P, O, F = W * W, W * W * start_ch, 2 * seq_size
    nH = C // ch_per_head

    key = jax.random.PRNGKey(0)
    ks = jax.random.split(key, 14)

    x = jax.random.normal(ks[0], (B, S, Dv), dtype=jnp.float32)
    masks = (jax.random.uniform(ks[1], (B, S)) < 0.7).astype(jnp.float32)
    masks = masks.at[:, 0].set(1.0)               # guarantee counts > 0
    counts = masks.sum(axis=1)

    params = {
        # [in, out] layouts (i.e. transposed nn.Linear weights).
        "w_fq": jax.random.normal(ks[2], (F, O), jnp.float32) * 0.05,
        "b_fq": jax.random.normal(ks[3], (O,), jnp.float32) * 0.01,
        "w_cq": jax.random.normal(ks[4], (1, O), jnp.float32) * 0.05,
        "w_fo": jax.random.normal(ks[5], (F, O), jnp.float32) * 0.05,
        "b_fo": jax.random.normal(ks[6], (O,), jnp.float32) * 0.01,
        "w_co": jax.random.normal(ks[7], (1, O), jnp.float32) * 0.05,
        "w_k": jax.random.normal(ks[8], (Dv, C), jnp.float32) * (1.0 / Dv) ** 0.5,
        "b_k": jax.random.normal(ks[9], (C,), jnp.float32) * 0.01,
        "w_v": jax.random.normal(ks[10], (Dv, C), jnp.float32) * (1.0 / Dv) ** 0.5,
        "b_v": jax.random.normal(ks[11], (C,), jnp.float32) * 0.01,
        # overall_weighting params (init would be gain=1, bias=mix_bias); small
        # perturbations so the gating path is numerically exercised.
        "gain": jnp.ones((nH,), jnp.float32)
                + 0.1 * jax.random.normal(ks[12], (nH,), jnp.float32),
        "obias": jnp.full((nH,), -2.0, jnp.float32)
                 + 0.1 * jax.random.normal(ks[13], (nH,), jnp.float32),
    }

    y = seq_to_image_start(x, masks, counts, params,
                           start_width=start_width, start_ch=start_ch,
                           ch_per_head=ch_per_head,
                           use_feat_to_output=use_feat_to_output)
    jax.block_until_ready(y)

    y_ref = _reference(x, masks, counts, params,
                       start_width=start_width, start_ch=start_ch,
                       ch_per_head=ch_per_head,
                       use_feat_to_output=use_feat_to_output)

    assert y.shape == (B, C, W, W), y.shape
    assert jnp.allclose(y, y_ref, atol=2e-4, rtol=2e-4), \
        float(jnp.max(jnp.abs(y - y_ref)))

    print("KERNEL_OK")
</pallas_src>

<mosaic_0001>
module attributes {stable_mosaic.version = 11 : i64} {
  func.func @_fused_kernel(%arg0: i32, %arg1: memref<1x32x32xf32, #tpu.memory_space<vmem>>, %arg2: memref<1x1x8xf32, #tpu.memory_space<vmem>>, %arg3: memref<1x1x32xf32, #tpu.memory_space<vmem>>, %arg4: memref<1x1x1xf32, #tpu.memory_space<vmem>>, %arg5: memref<64x1024xf32, #tpu.memory_space<vmem>>, %arg6: memref<1x1024xf32, #tpu.memory_space<vmem>>, %arg7: memref<1x1024xf32, #tpu.memory_space<vmem>>, %arg8: memref<16x1024xf32, #tpu.memory_space<vmem>>, %arg9: memref<1024x64xf32, #tpu.memory_space<vmem>>, %arg10: memref<32x64xf32, #tpu.memory_space<vmem>>, %arg11: memref<1x64xf32, #tpu.memory_space<vmem>>, %arg12: memref<32x64xf32, #tpu.memory_space<vmem>>, %arg13: memref<32x4xf32, #tpu.memory_space<vmem>>, %arg14: memref<4x32xf32, #tpu.memory_space<vmem>>, %arg15: memref<1x4xf32, #tpu.memory_space<vmem>>, %arg16: memref<1x4xf32, #tpu.memory_space<vmem>>, %arg17: memref<1x16x32xf32, #tpu.memory_space<vmem>>) attributes {dimension_semantics = [#tpu.dimension_semantics<parallel>], iteration_bounds = array<i64: 2>, scalar_prefetch = 0 : i64, scratch_operands = 0 : i64, tpu.core_type = #tpu.core_type<tc>, window_params = [{transform_indices = @transform_0, window_bounds = array<i64: 1, 32, 32>}, {transform_indices = @transform_1, window_bounds = array<i64: 1, 1, 8>}, {transform_indices = @transform_2, window_bounds = array<i64: 1, 1, 32>}, {transform_indices = @transform_3, window_bounds = array<i64: 1, 1, 1>}, {pipeline_mode = #tpu.pipeline_mode<synchronous>, transform_indices = @transform_4, window_bounds = array<i64: 64, 1024>}, {pipeline_mode = #tpu.pipeline_mode<synchronous>, transform_indices = @transform_5, window_bounds = array<i64: 1, 1024>}, {pipeline_mode = #tpu.pipeline_mode<synchronous>, transform_indices = @transform_6, window_bounds = array<i64: 1, 1024>}, {pipeline_mode = #tpu.pipeline_mode<synchronous>, transform_indices = @transform_7, window_bounds = array<i64: 16, 1024>}, {pipeline_mode = #tpu.pipeline_mode<synchronous>, transform_indices = @transform_8, window_bounds = array<i64: 1024, 64>}, {pipeline_mode = #tpu.pipeline_mode<synchronous>, transform_indices = @transform_9, window_bounds = array<i64: 32, 64>}, {pipeline_mode = #tpu.pipeline_mode<synchronous>, transform_indices = @transform_10, window_bounds = array<i64: 1, 64>}, {pipeline_mode = #tpu.pipeline_mode<synchronous>, transform_indices = @transform_11, window_bounds = array<i64: 32, 64>}, {pipeline_mode = #tpu.pipeline_mode<synchronous>, transform_indices = @transform_12, window_bounds = array<i64: 32, 4>}, {pipeline_mode = #tpu.pipeline_mode<synchronous>, transform_indices = @transform_13, window_bounds = array<i64: 4, 32>}, {pipeline_mode = #tpu.pipeline_mode<synchronous>, transform_indices = @transform_14, window_bounds = array<i64: 1, 4>}, {pipeline_mode = #tpu.pipeline_mode<synchronous>, transform_indices = @transform_15, window_bounds = array<i64: 1, 4>}, {transform_indices = @transform_16, window_bounds = array<i64: 1, 16, 32>}]} {
    %c0 = arith.constant 0 : index
    %c0_0 = arith.constant 0 : index
    %c0_1 = arith.constant 0 : index
    %0 = vector.load %arg1[%c0, %c0_0, %c0_1] : memref<1x32x32xf32, #tpu.memory_space<vmem>>, vector<1x32x32xf32>
    %1 = vector.shape_cast %0 : vector<1x32x32xf32> to vector<32x32xf32>
    %2 = vector.extract_strided_slice %1 {offsets = [0, 0], sizes = [8, 32], strides = [1, 1]} : vector<32x32xf32> to vector<8x32xf32>
    %c0_2 = arith.constant 0 : index
    %c0_3 = arith.constant 0 : index
    %c0_4 = arith.constant 0 : index
    %3 = vector.load %arg2[%c0_2, %c0_3, %c0_4] : memref<1x1x8xf32, #tpu.memory_space<vmem>>, vector<1x1x8xf32>
    %4 = vector.shape_cast %3 : vector<1x1x8xf32> to vector<1x8xf32>
    %c0_5 = arith.constant 0 : index
    %c0_6 = arith.constant 0 : index
    %c0_7 = arith.constant 0 : index
    %5 = vector.load %arg3[%c0_5, %c0_6, %c0_7] : memref<1x1x32xf32, #tpu.memory_space<vmem>>, vector<1x1x32xf32>
    %6 = vector.shape_cast %5 : vector<1x1x32xf32> to vector<1x32xf32>
    %c0_8 = arith.constant 0 : index
    %c0_9 = arith.constant 0 : index
    %c0_10 = arith.constant 0 : index
    %7 = vector.load %arg4[%c0_8, %c0_9, %c0_10] : memref<1x1x1xf32, #tpu.memory_space<vmem>>, vector<1x1x1xf32>
    %8 = vector.shape_cast %7 : vector<1x1x1xf32> to vector<1x1xf32>
    %cst = arith.constant 1.000000e+00 : f32
    %9 = vector.broadcast %cst : f32 to vector<1x1xf32>
    %10 = arith.divf %9, %8 : vector<1x1xf32>
    %11 = math.rsqrt %8 : vector<1x1xf32>
    %12 = vector.shape_cast %4 : vector<1x8xf32> to vector<1x8xf32>
    %13 = vector.broadcast %12 : vector<1x8xf32> to vector<16x8xf32>
    %cst_11 = arith.constant dense<0.000000e+00> : vector<16x32xf32>
    %14 = tpu.matmul %13, %2, %cst_11 {dimension_numbers = #tpu.dot_dimension_numbers<[1], [0], [0], [1], [0, 0, 1, 1], [], []>} : vector<16x8xf32>, vector<8x32xf32>, vector<16x32xf32> -> vector<16x32xf32>
    %15 = vector.broadcast %10 : vector<1x1xf32> to vector<16x32xf32>
    %16 = arith.mulf %14, %15 : vector<16x32xf32>
    %c0_12 = arith.constant 0 : index
    %c0_13 = arith.constant 0 : index
    %17 = vector.load %arg5[%c0_12, %c0_13] : memref<64x1024xf32, #tpu.memory_space<vmem>>, vector<32x1024xf32>
    %cst_14 = arith.constant dense<0.000000e+00> : vector<16x1024xf32>
    %18 = tpu.matmul %16, %17, %cst_14 {dimension_numbers = #tpu.dot_dimension_numbers<[1], [0], [0], [1], [0, 0, 1, 1], [], []>} : vector<16x32xf32>, vector<32x1024xf32>, vector<16x1024xf32> -> vector<16x1024xf32>
    %c32 = arith.constant 32 : index
    %c0_15 = arith.constant 0 : index
    %19 = vector.load %arg5[%c32, %c0_15] : memref<64x1024xf32, #tpu.memory_space<vmem>>, vector<32x1024xf32>
    %cst_16 = arith.constant dense<0.000000e+00> : vector<16x1024xf32>
    %20 = tpu.matmul %14, %19, %cst_16 {dimension_numbers = #tpu.dot_dimension_numbers<[1], [0], [0], [1], [0, 0, 1, 1], [], []>} : vector<16x32xf32>, vector<32x1024xf32>, vector<16x1024xf32> -> vector<16x1024xf32>
    %21 = arith.addf %18, %20 : vector<16x1024xf32>
    %c0_17 = arith.constant 0 : index
    %c0_18 = arith.constant 0 : index
    %22 = vector.load %arg6[%c0_17, %c0_18] : memref<1x1024xf32, #tpu.memory_space<vmem>>, vector<1x1024xf32>
    %23 = vector.broadcast %22 : vector<1x1024xf32> to vector<16x1024xf32>
    %24 = arith.addf %21, %23 : vector<16x1024xf32>
    %c0_19 = arith.constant 0 : index
    %c0_20 = arith.constant 0 : index
    %25 = vector.load %arg7[%c0_19, %c0_20] : memref<1x1024xf32, #tpu.memory_space<vmem>>, vector<1x1024xf32>
    %26 = vector.broadcast %8 : vector<1x1xf32> to vector<1x1024xf32>
    %27 = arith.mulf %26, %25 : vector<1x1024xf32>
    %28 = vector.broadcast %27 : vector<1x1024xf32> to vector<16x1024xf32>
    %29 = arith.addf %24, %28 : vector<16x1024xf32>
    %c0_21 = arith.constant 0 : index
    %c0_22 = arith.constant 0 : index
    %30 = vector.load %arg8[%c0_21, %c0_22] : memref<16x1024xf32, #tpu.memory_space<vmem>>, vector<16x1024xf32>
    %31 = arith.mulf %29, %30 : vector<16x1024xf32>
    %c0_23 = arith.constant 0 : index
    %c0_24 = arith.constant 0 : index
    %32 = vector.load %arg9[%c0_23, %c0_24] : memref<1024x64xf32, #tpu.memory_space<vmem>>, vector<1024x64xf32>
    %cst_25 = arith.constant dense<0.000000e+00> : vector<16x64xf32>
    %33 = tpu.matmul %31, %32, %cst_25 {dimension_numbers = #tpu.dot_dimension_numbers<[1], [0], [0], [1], [0, 0, 1, 1], [], []>} : vector<16x1024xf32>, vector<1024x64xf32>, vector<16x64xf32> -> vector<16x64xf32>
    %34 = vector.extract_strided_slice %33 {offsets = [0, 0], sizes = [16, 32], strides = [1, 1]} : vector<16x64xf32> to vector<16x32xf32>
    %c0_26 = arith.constant 0 : index
    %c0_27 = arith.constant 0 : index
    %35 = vector.load %arg10[%c0_26, %c0_27] : memref<32x64xf32, #tpu.memory_space<vmem>>, vector<32x64xf32>
    %cst_28 = arith.constant dense<0.000000e+00> : vector<32x64xf32>
    %36 = tpu.matmul %1, %35, %cst_28 {dimension_numbers = #tpu.dot_dimension_numbers<[1], [0], [0], [1], [0, 0, 1, 1], [], []>} : vector<32x32xf32>, vector<32x64xf32>, vector<32x64xf32> -> vector<32x64xf32>
    %c0_29 = arith.constant 0 : index
    %c0_30 = arith.constant 0 : index
    %37 = vector.load %arg11[%c0_29, %c0_30] : memref<1x64xf32, #tpu.memory_space<vmem>>, vector<1x64xf32>
    %38 = vector.broadcast %37 : vector<1x64xf32> to vector<32x64xf32>
    %39 = arith.addf %36, %38 : vector<32x64xf32>
    %c0_31 = arith.constant 0 : index
    %c0_32 = arith.constant 0 : index
    %40 = vector.load %arg12[%c0_31, %c0_32] : memref<32x64xf32, #tpu.memory_space<vmem>>, vector<32x64xf32>
    %41 = arith.mulf %39, %40 : vector<32x64xf32>
    %42 = vector.extract_strided_slice %41 {offsets = [0, 0], sizes = [32, 32], strides = [1, 1]} : vector<32x64xf32> to vector<32x32xf32>
    %43 = vector.extract_strided_slice %41 {offsets = [0, 32], sizes = [32, 32], strides = [1, 1]} : vector<32x64xf32> to vector<32x32xf32>
    %cst_33 = arith.constant dense<0.000000e+00> : vector<16x32xf32>
    %44 = tpu.matmul %34, %42, %cst_33 {dimension_numbers = #tpu.dot_dimension_numbers<[1], [1], [0], [0], [0, 0, 1, 0], [], []>} : vector<16x32xf32>, vector<32x32xf32>, vector<16x32xf32> -> vector<16x32xf32>
    %45 = vector.broadcast %6 : vector<1x32xf32> to vector<16x32xf32>
    %46 = arith.mulf %44, %45 : vector<16x32xf32>
    %c0_34 = arith.constant 0 : index
    %c0_35 = arith.constant 0 : index
    %47 = vector.load %arg13[%c0_34, %c0_35] : memref<32x4xf32, #tpu.memory_space<vmem>>, vector<32x4xf32>
    %cst_36 = arith.constant dense<0.000000e+00> : vector<16x4xf32>
    %48 = tpu.matmul %46, %47, %cst_36 {dimension_numbers = #tpu.dot_dimension_numbers<[1], [0], [0], [1], [0, 0, 1, 1], [], []>} : vector<16x32xf32>, vector<32x4xf32>, vector<16x4xf32> -> vector<16x4xf32>
    %49 = vector.broadcast %10 : vector<1x1xf32> to vector<16x4xf32>
    %50 = arith.mulf %48, %49 : vector<16x4xf32>
    %c0_37 = arith.constant 0 : index
    %c0_38 = arith.constant 0 : index
    %51 = vector.load %arg15[%c0_37, %c0_38] : memref<1x4xf32, #tpu.memory_space<vmem>>, vector<1x4xf32>
    %52 = vector.broadcast %51 : vector<1x4xf32> to vector<16x4xf32>
    %53 = arith.mulf %50, %52 : vector<16x4xf32>
    %c0_39 = arith.constant 0 : index
    %c0_40 = arith.constant 0 : index
    %54 = vector.load %arg16[%c0_39, %c0_40] : memref<1x4xf32, #tpu.memory_space<vmem>>, vector<1x4xf32>
    %55 = vector.broadcast %54 : vector<1x4xf32> to vector<16x4xf32>
    %56 = arith.addf %53, %55 : vector<16x4xf32>
    %57 = arith.negf %56 : vector<16x4xf32>
    %58 = math.exp %57 : vector<16x4xf32>
    %cst_41 = arith.constant 1.000000e+00 : f32
    %59 = vector.broadcast %cst_41 : f32 to vector<16x4xf32>
    %60 = arith.addf %59, %58 : vector<16x4xf32>
    %61 = arith.divf %59, %60 : vector<16x4xf32>
    %cst_42 = arith.constant 0.000000e+00 : f32
    %62 = vector.broadcast %cst_42 : f32 to vector<1x32xf32>
    %63 = arith.cmpf oeq, %6, %62 : vector<1x32xf32>
    %cst_43 = arith.constant -1.000000e+30 : f32
    %cst_44 = arith.constant 0.000000e+00 : f32
    %64 = vector.broadcast %cst_43 : f32 to vector<1x32xf32>
    %65 = vector.broadcast %cst_44 : f32 to vector<1x32xf32>
    %66 = arith.select %63, %64, %65 : vector<1x32xi1>, vector<1x32xf32>
    %67 = vector.broadcast %11 : vector<1x1xf32> to vector<16x32xf32>
    %68 = arith.mulf %44, %67 : vector<16x32xf32>
    %69 = vector.broadcast %66 : vector<1x32xf32> to vector<16x32xf32>
    %70 = arith.addf %68, %69 : vector<16x32xf32>
    %cst_45 = arith.constant dense<0xFF800000> : vector<16xf32>
    %71 = vector.multi_reduction <maximumf>, %70, %cst_45 [1] : vector<16x32xf32> to vector<16xf32>
    %72 = vector.shape_cast %71 : vector<16xf32> to vector<16x1xf32>
    %73 = vector.broadcast %72 : vector<16x1xf32> to vector<16x32xf32>
    %74 = arith.subf %70, %73 : vector<16x32xf32>
    %75 = math.exp %74 : vector<16x32xf32>
    %c0_46 = arith.constant 0 : index
    %c0_47 = arith.constant 0 : index
    %76 = vector.load %arg13[%c0_46, %c0_47] : memref<32x4xf32, #tpu.memory_space<vmem>>, vector<32x4xf32>
    %cst_48 = arith.constant dense<0.000000e+00> : vector<16x4xf32>
    %77 = tpu.matmul %75, %76, %cst_48 {dimension_numbers = #tpu.dot_dimension_numbers<[1], [0], [0], [1], [0, 0, 1, 1], [], []>} : vector<16x32xf32>, vector<32x4xf32>, vector<16x4xf32> -> vector<16x4xf32>
    %cst_49 = arith.constant dense<0.000000e+00> : vector<16x32xf32>
    %78 = tpu.matmul %75, %43, %cst_49 {dimension_numbers = #tpu.dot_dimension_numbers<[1], [0], [0], [1], [0, 0, 1, 1], [], []>} : vector<16x32xf32>, vector<32x32xf32>, vector<16x32xf32> -> vector<16x32xf32>
    %79 = arith.divf %61, %77 : vector<16x4xf32>
    %c0_50 = arith.constant 0 : index
    %c0_51 = arith.constant 0 : index
    %80 = vector.load %arg14[%c0_50, %c0_51] : memref<4x32xf32, #tpu.memory_space<vmem>>, vector<4x32xf32>
    %cst_52 = arith.constant dense<0.000000e+00> : vector<16x32xf32>
    %81 = tpu.matmul %79, %80, %cst_52 {dimension_numbers = #tpu.dot_dimension_numbers<[1], [0], [0], [1], [0, 0, 1, 1], [], []>} : vector<16x4xf32>, vector<4x32xf32>, vector<16x32xf32> -> vector<16x32xf32>
    %82 = arith.mulf %78, %81 : vector<16x32xf32>
    %83 = vector.extract_strided_slice %33 {offsets = [0, 32], sizes = [16, 32], strides = [1, 1]} : vector<16x64xf32> to vector<16x32xf32>
    %84 = arith.addf %82, %83 : vector<16x32xf32>
    %c0_53 = arith.constant 0 : index
    %c0_54 = arith.constant 0 : index
    %c0_55 = arith.constant 0 : index
    %85 = vector.load %arg17[%c0_53, %c0_54, %c0_55] : memref<1x16x32xf32, #tpu.memory_space<vmem>>, vector<1x16x32xf32>
    %86 = vector.shape_cast %85 : vector<1x16x32xf32> to vector<16x32xf32>
    %87 = vector.shape_cast %84 : vector<16x32xf32> to vector<1x16x32xf32>
    tpu.vector_store %arg17[%c0_53, %c0_54, %c0_55], %87 {strides = array<i32>} : memref<1x16x32xf32, #tpu.memory_space<vmem>>, vector<1x16x32xf32>,
    return
  }
  func.func @transform_0(%arg0: i32) -> (i32, i32, i32) {
    %c0_i32 = arith.constant 0 : i32
    %c0_i32_0 = arith.constant 0 : i32
    %c0_i32_1 = arith.constant 0 : i32
    return %arg0, %c0_i32, %c0_i32_0 : i32, i32, i32
  }
  func.func @transform_1(%arg0: i32) -> (i32, i32, i32) {
    %c0_i32 = arith.constant 0 : i32
    %c0_i32_0 = arith.constant 0 : i32
    %c0_i32_1 = arith.constant 0 : i32
    return %arg0, %c0_i32, %c0_i32_0 : i32, i32, i32
  }
  func.func @transform_2(%arg0: i32) -> (i32, i32, i32) {
    %c0_i32 = arith.constant 0 : i32
    %c0_i32_0 = arith.constant 0 : i32
    %c0_i32_1 = arith.constant 0 : i32
    return %arg0, %c0_i32, %c0_i32_0 : i32, i32, i32
  }
  func.func @transform_3(%arg0: i32) -> (i32, i32, i32) {
    %c0_i32 = arith.constant 0 : i32
    %c0_i32_0 = arith.constant 0 : i32
    %c0_i32_1 = arith.constant 0 : i32
    return %arg0, %c0_i32, %c0_i32_0 : i32, i32, i32
  }
  func.func @transform_4(%arg0: i32) -> (i32, i32) {
    %c0_i32 = arith.constant 0 : i32
    %c0_i32_0 = arith.constant 0 : i32
    %c0_i32_1 = arith.constant 0 : i32
    return %c0_i32, %c0_i32_0 : i32, i32
  }
  func.func @transform_5(%arg0: i32) -> (i32, i32) {
    %c0_i32 = arith.constant 0 : i32
    %c0_i32_0 = arith.constant 0 : i32
    %c0_i32_1 = arith.constant 0 : i32
    return %c0_i32, %c0_i32_0 : i32, i32
  }
  func.func @transform_6(%arg0: i32) -> (i32, i32) {
    %c0_i32 = arith.constant 0 : i32
    %c0_i32_0 = arith.constant 0 : i32
    %c0_i32_1 = arith.constant 0 : i32
    return %c0_i32, %c0_i32_0 : i32, i32
  }
  func.func @transform_7(%arg0: i32) -> (i32, i32) {
    %c0_i32 = arith.constant 0 : i32
    %c0_i32_0 = arith.constant 0 : i32
    %c0_i32_1 = arith.constant 0 : i32
    return %c0_i32, %c0_i32_0 : i32, i32
  }
  func.func @transform_8(%arg0: i32) -> (i32, i32) {
    %c0_i32 = arith.constant 0 : i32
    %c0_i32_0 = arith.constant 0 : i32
    %c0_i32_1 = arith.constant 0 : i32
    return %c0_i32, %c0_i32_0 : i32, i32
  }
  func.func @transform_9(%arg0: i32) -> (i32, i32) {
    %c0_i32 = arith.constant 0 : i32
    %c0_i32_0 = arith.constant 0 : i32
    %c0_i32_1 = arith.constant 0 : i32
    return %c0_i32, %c0_i32_0 : i32, i32
  }
  func.func @transform_10(%arg0: i32) -> (i32, i32) {
    %c0_i32 = arith.constant 0 : i32
    %c0_i32_0 = arith.constant 0 : i32
    %c0_i32_1 = arith.constant 0 : i32
    return %c0_i32, %c0_i32_0 : i32, i32
  }
  func.func @transform_11(%arg0: i32) -> (i32, i32) {
    %c0_i32 = arith.constant 0 : i32
    %c0_i32_0 = arith.constant 0 : i32
    %c0_i32_1 = arith.constant 0 : i32
    return %c0_i32, %c0_i32_0 : i32, i32
  }
  func.func @transform_12(%arg0: i32) -> (i32, i32) {
    %c0_i32 = arith.constant 0 : i32
    %c0_i32_0 = arith.constant 0 : i32
    %c0_i32_1 = arith.constant 0 : i32
    return %c0_i32, %c0_i32_0 : i32, i32
  }
  func.func @transform_13(%arg0: i32) -> (i32, i32) {
    %c0_i32 = arith.constant 0 : i32
    %c0_i32_0 = arith.constant 0 : i32
    %c0_i32_1 = arith.constant 0 : i32
    return %c0_i32, %c0_i32_0 : i32, i32
  }
  func.func @transform_14(%arg0: i32) -> (i32, i32) {
    %c0_i32 = arith.constant 0 : i32
    %c0_i32_0 = arith.constant 0 : i32
    %c0_i32_1 = arith.constant 0 : i32
    return %c0_i32, %c0_i32_0 : i32, i32
  }
  func.func @transform_15(%arg0: i32) -> (i32, i32) {
    %c0_i32 = arith.constant 0 : i32
    %c0_i32_0 = arith.constant 0 : i32
    %c0_i32_1 = arith.constant 0 : i32
    return %c0_i32, %c0_i32_0 : i32, i32
  }
  func.func @transform_16(%arg0: i32) -> (i32, i32, i32) {
    %c0_i32 = arith.constant 0 : i32
    %c0_i32_0 = arith.constant 0 : i32
    %c0_i32_1 = arith.constant 0 : i32
    return %arg0, %c0_i32, %c0_i32_0 : i32, i32, i32
  }
}

</mosaic_0001>

<llo_original>
// kernel: tpu_custom_call.1
$region0: #{tpu_custom_call.1}
  #allocation0 [shape = 'u32[]', space=smem, size = 0x4, offset = 0x4, fixed_abs, tag = 'smem constant byte address 0x4 - core index']
  #allocation1 [shape = 'u32[72,128]{1,0:T(1,128)}', space=vmem, size = 0x9000, scoped, tag = 'internal scratch']
  %s0 = inlined_call_operand.vmem [shape: f32[2,32,32], index: 0, kind: input, shape index: {}]
  %s1 = inlined_call_operand.vmem [shape: f32[2,1,8], index: 1, kind: input, shape index: {}]
  %s2 = inlined_call_operand.vmem [shape: f32[2,1,32], index: 2, kind: input, shape index: {}]
  %s3 = inlined_call_operand.vmem [shape: f32[2,1,1], index: 3, kind: input, shape index: {}]
  %s4 = inlined_call_operand.vmem [shape: f32[64,1024], index: 4, kind: input, shape index: {}]
  %s5 = inlined_call_operand.vmem [shape: f32[1,1024], index: 5, kind: input, shape index: {}]
  %s6 = inlined_call_operand.vmem [shape: f32[1,1024], index: 6, kind: input, shape index: {}]
  %s7 = inlined_call_operand.vmem [shape: f32[16,1024], index: 7, kind: input, shape index: {}]
  %s8 = inlined_call_operand.vmem [shape: f32[1024,64], index: 8, kind: input, shape index: {}]
  %s9 = inlined_call_operand.vmem [shape: f32[32,64], index: 9, kind: input, shape index: {}]
  %s10 = inlined_call_operand.vmem [shape: f32[1,64], index: 10, kind: input, shape index: {}]
  %s11 = inlined_call_operand.vmem [shape: f32[32,64], index: 11, kind: input, shape index: {}]
  %s12 = inlined_call_operand.vmem [shape: f32[32,4], index: 12, kind: input, shape index: {}]
  %s13 = inlined_call_operand.vmem [shape: f32[4,32], index: 13, kind: input, shape index: {}]
  %s14 = inlined_call_operand.vmem [shape: f32[1,4], index: 14, kind: input, shape index: {}]
  %s15 = inlined_call_operand.vmem [shape: f32[1,4], index: 15, kind: input, shape index: {}]
  %s16 = inlined_call_operand.hbm [shape: f32[2,16,32], index: 16, kind: output, shape index: {}]
  %s17 = sld [smem:[#allocation0]]
  $region97: #{tpu_custom_call.1} parent=0
    _
  %s19 = ssub.s32 1, %s17
  %s20 = scalar_select 0, %s19, %s17
  $region1: #{tpu_custom_call.1} parent=0
    #allocation2 [shape = 'u8[16384]{0}', space=vmem, size = 0x4000, scoped, tag = 'output window, operand 0']
    #allocation3 [shape = 's32[2]{0}', space=sflag, size = 0x8, scoped, tag = 'scoped memory for tpu_custom_call.1']
    %21 = vsyncpa [#allocation3], 0
    %s22 = scalar_lea.sflag [#allocation3], 1
    %23 = vsyncpa %s22, 0
    loop: start=0, step=1, limit=4
    $region2: #{tpu_custom_call.1} parent=1 // loop_pre_header
      _
    $region3: #{tpu_custom_call.1} parent=1 // loop_header
      %s25 = sphi 0, %s29
      %p26 = scmp.ge.s32.totalorder %s25, 4
      %s35 = sphi 0, %s37
      %s38 = sphi 0, %s35
      %s39 = sphi 0, %s38
      %s55 = sphi 0, %s39
      %s61 = sphi 0, %s63
      %s64 = sphi 0, %s61
      %s65 = sphi 0, %s64
      %s81 = sphi 0, %s65
      %s87 = sphi 0, %s89
      %s90 = sphi 0, %s87
      %s91 = sphi 0, %s90
      %s107 = sphi 0, %s91
      %s113 = sphi 0, %s115
      %s116 = sphi 0, %s113
      %s117 = sphi 0, %s116
      %s133 = sphi 0, %s117
      %s137 = sphi 0, %s137
      %s139 = sphi 0, %s137
      %s140 = sphi 0, %s139
      %s154 = sphi 0, %s140
      %s158 = sphi 0, %s158
      %s160 = sphi 0, %s158
      %s161 = sphi 0, %s160
      %s175 = sphi 0, %s161
      %s179 = sphi 0, %s179
      %s181 = sphi 0, %s179
      %s182 = sphi 0, %s181
      %s196 = sphi 0, %s182
      %s200 = sphi 0, %s200
      %s202 = sphi 0, %s200
      %s203 = sphi 0, %s202
      %s217 = sphi 0, %s203
      %s221 = sphi 0, %s221
      %s223 = sphi 0, %s221
      %s224 = sphi 0, %s223
      %s238 = sphi 0, %s224
      %s242 = sphi 0, %s242
      %s244 = sphi 0, %s242
      %s245 = sphi 0, %s244
      %s259 = sphi 0, %s245
      %s263 = sphi 0, %s263
      %s265 = sphi 0, %s263
      %s266 = sphi 0, %s265
      %s280 = sphi 0, %s266
      %s284 = sphi 0, %s284
      %s286 = sphi 0, %s284
      %s287 = sphi 0, %s286
      %s301 = sphi 0, %s287
      %s305 = sphi 0, %s305
      %s307 = sphi 0, %s305
      %s308 = sphi 0, %s307
      %s322 = sphi 0, %s308
      %s326 = sphi 0, %s326
      %s328 = sphi 0, %s326
      %s329 = sphi 0, %s328
      %s343 = sphi 0, %s329
      %s347 = sphi 0, %s347
      %s349 = sphi 0, %s347
      %s350 = sphi 0, %s349
      %s364 = sphi 0, %s350
      %s368 = sphi 0, %s368
      %s370 = sphi 0, %s368
      %s371 = sphi 0, %s370
      %s385 = sphi 0, %s371
      %s391 = sphi 0, %s393
      %s394 = sphi 0, %s391
      %s395 = sphi 0, %s394
      %s411 = sphi 0, %s395
    $region4: #{tpu_custom_call.1} parent=1 // loop_header_branch
      %28 = sbr.rel (%p26) target = $region8
    $region5: #{tpu_custom_call.1} parent=1 // loop_body
      %s30 = ssub.s32 %s25, 1
      %s31 = ssub.s32 %s25, 2
      %s32 = sadd.s32 %s25, 1
      %s33 = ssub.s32 %s25, %s32
      %p34 = scmp.eq.s32.totalorder %s33, 0
      %s36 = sadd.s32 %s35, 1
      %s37 = scalar_select %p34, %s35, %s36
      %p40 = pneg %p34
      %p41 = scmp.eq.s32.totalorder %s25, 1
      %p42 = por %p40, %p41
      %p43 = scmp.ne.s32.totalorder %s35, %s38
      %p44 = scmp.eq.s32.totalorder %s25, 0
      %p45 = por %p43, %p44
      %p46 = scmp.ne.s32.totalorder %s35, %s38
      %p47 = scmp.eq.s32.totalorder %s30, 1
      %p48 = por %p46, %p47
      %p49 = scmp.ne.s32.totalorder %s38, %s39
      %p50 = scmp.eq.s32.totalorder %s30, 0
      %p51 = por %p49, %p50
      %p52 = scmp.ne.s32.totalorder %s38, %s39
      %p53 = scmp.eq.s32.totalorder %s31, 1
      %p54 = por %p52, %p53
      %p56 = scmp.ne.s32.totalorder %s39, %s55
      %p57 = scmp.eq.s32.totalorder %s31, 0
      %p58 = por %p56, %p57
      %s59 = ssub.s32 %s25, %s32
      %p60 = scmp.eq.s32.totalorder %s59, 0
      %s62 = sadd.s32 %s61, 1
      %s63 = scalar_select %p60, %s61, %s62
      %p66 = pneg %p60
      %p67 = scmp.eq.s32.totalorder %s25, 1
      %p68 = por %p66, %p67
      %p69 = scmp.ne.s32.totalorder %s61, %s64
      %p70 = scmp.eq.s32.totalorder %s25, 0
      %p71 = por %p69, %p70
      %p72 = scmp.ne.s32.totalorder %s61, %s64
      %p73 = scmp.eq.s32.totalorder %s30, 1
      %p74 = por %p72, %p73
      %p75 = scmp.ne.s32.totalorder %s64, %s65
      %p76 = scmp.eq.s32.totalorder %s30, 0
      %p77 = por %p75, %p76
      %p78 = scmp.ne.s32.totalorder %s64, %s65
      %p79 = scmp.eq.s32.totalorder %s31, 1
      %p80 = por %p78, %p79
      %p82 = scmp.ne.s32.totalorder %s65, %s81
      %p83 = scmp.eq.s32.totalorder %s31, 0
      %p84 = por %p82, %p83
      %s85 = ssub.s32 %s25, %s32
      %p86 = scmp.eq.s32.totalorder %s85, 0
      %s88 = sadd.s32 %s87, 1
      %s89 = scalar_select %p86, %s87, %s88
      %p92 = pneg %p86
      %p93 = scmp.eq.s32.totalorder %s25, 1
      %p94 = por %p92, %p93
      %p95 = scmp.ne.s32.totalorder %s87, %s90
      %p96 = scmp.eq.s32.totalorder %s25, 0
      %p97 = por %p95, %p96
      %p98 = scmp.ne.s32.totalorder %s87, %s90
      %p99 = scmp.eq.s32.totalorder %s30, 1
      %p100 = por %p98, %p99
      %p101 = scmp.ne.s32.totalorder %s90, %s91
      %p102 = scmp.eq.s32.totalorder %s30, 0
      %p103 = por %p101, %p102
      %p104 = scmp.ne.s32.totalorder %s90, %s91
      %p105 = scmp.eq.s32.totalorder %s31, 1
      %p106 = por %p104, %p105
      %p108 = scmp.ne.s32.totalorder %s91, %s107
      %p109 = scmp.eq.s32.totalorder %s31, 0
      %p110 = por %p108, %p109
      %s111 = ssub.s32 %s25, %s32
      %p112 = scmp.eq.s32.totalorder %s111, 0
      %s114 = sadd.s32 %s113, 1
      %s115 = scalar_select %p112, %s113, %s114
      %p118 = pneg %p112
      %p119 = scmp.eq.s32.totalorder %s25, 1
      %p120 = por %p118, %p119
      %p121 = scmp.ne.s32.totalorder %s113, %s116
      %p122 = scmp.eq.s32.totalorder %s25, 0
      %p123 = por %p121, %p122
      %p124 = scmp.ne.s32.totalorder %s113, %s116
      %p125 = scmp.eq.s32.totalorder %s30, 1
      %p126 = por %p124, %p125
      %p127 = scmp.ne.s32.totalorder %s116, %s117
      %p128 = scmp.eq.s32.totalorder %s30, 0
      %p129 = por %p127, %p128
      %p130 = scmp.ne.s32.totalorder %s116, %s117
      %p131 = scmp.eq.s32.totalorder %s31, 1
      %p132 = por %p130, %p131
      %p134 = scmp.ne.s32.totalorder %s117, %s133
      %p135 = scmp.eq.s32.totalorder %s31, 0
      %p136 = por %p134, %p135
      %s138 = sadd.s32 %s137, 1
      %p141 = scmp.eq.s32.totalorder %s25, 1
      %p142 = scmp.ne.s32.totalorder %s137, %s139
      %p143 = scmp.eq.s32.totalorder %s25, 0
      %p144 = por %p142, %p143
      %p145 = scmp.ne.s32.totalorder %s137, %s139
      %p146 = scmp.eq.s32.totalorder %s30, 1
      %p147 = por %p145, %p146
      %p148 = scmp.ne.s32.totalorder %s139, %s140
      %p149 = scmp.eq.s32.totalorder %s30, 0
      %p150 = por %p148, %p149
      %p151 = scmp.ne.s32.totalorder %s139, %s140
      %p152 = scmp.eq.s32.totalorder %s31, 1
      %p153 = por %p151, %p152
      %p155 = scmp.ne.s32.totalorder %s140, %s154
      %p156 = scmp.eq.s32.totalorder %s31, 0
      %p157 = por %p155, %p156
      %s159 = sadd.s32 %s158, 1
      %p162 = scmp.eq.s32.totalorder %s25, 1
      %p163 = scmp.ne.s32.totalorder %s158, %s160
      %p164 = scmp.eq.s32.totalorder %s25, 0
      %p165 = por %p163, %p164
      %p166 = scmp.ne.s32.totalorder %s158, %s160
      %p167 = scmp.eq.s32.totalorder %s30, 1
      %p168 = por %p166, %p167
      %p169 = scmp.ne.s32.totalorder %s160, %s161
      %p170 = scmp.eq.s32.totalorder %s30, 0
      %p171 = por %p169, %p170
      %p172 = scmp.ne.s32.totalorder %s160, %s161
      %p173 = scmp.eq.s32.totalorder %s31, 1
      %p174 = por %p172, %p173
      %p176 = scmp.ne.s32.totalorder %s161, %s175
      %p177 = scmp.eq.s32.totalorder %s31, 0
      %p178 = por %p176, %p177
      %s180 = sadd.s32 %s179, 1
      %p183 = scmp.eq.s32.totalorder %s25, 1
      %p184 = scmp.ne.s32.totalorder %s179, %s181
      %p185 = scmp.eq.s32.totalorder %s25, 0
      %p186 = por %p184, %p185
      %p187 = scmp.ne.s32.totalorder %s179, %s181
      %p188 = scmp.eq.s32.totalorder %s30, 1
      %p189 = por %p187, %p188
      %p190 = scmp.ne.s32.totalorder %s181, %s182
      %p191 = scmp.eq.s32.totalorder %s30, 0
      %p192 = por %p190, %p191
      %p193 = scmp.ne.s32.totalorder %s181, %s182
      %p194 = scmp.eq.s32.totalorder %s31, 1
      %p195 = por %p193, %p194
      %p197 = scmp.ne.s32.totalorder %s182, %s196
      %p198 = scmp.eq.s32.totalorder %s31, 0
      %p199 = por %p197, %p198
      %s201 = sadd.s32 %s200, 1
      %p204 = scmp.eq.s32.totalorder %s25, 1
      %p205 = scmp.ne.s32.totalorder %s200, %s202
      %p206 = scmp.eq.s32.totalorder %s25, 0
      %p207 = por %p205, %p206
      %p208 = scmp.ne.s32.totalorder %s200, %s202
      %p209 = scmp.eq.s32.totalorder %s30, 1
      %p210 = por %p208, %p209
      %p211 = scmp.ne.s32.totalorder %s202, %s203
      %p212 = scmp.eq.s32.totalorder %s30, 0
      %p213 = por %p211, %p212
      %p214 = scmp.ne.s32.totalorder %s202, %s203
      %p215 = scmp.eq.s32.totalorder %s31, 1
      %p216 = por %p214, %p215
      %p218 = scmp.ne.s32.totalorder %s203, %s217
      %p219 = scmp.eq.s32.totalorder %s31, 0
      %p220 = por %p218, %p219
      %s222 = sadd.s32 %s221, 1
      %p225 = scmp.eq.s32.totalorder %s25, 1
      %p226 = scmp.ne.s32.totalorder %s221, %s223
      %p227 = scmp.eq.s32.totalorder %s25, 0
      %p228 = por %p226, %p227
      %p229 = scmp.ne.s32.totalorder %s221, %s223
      %p230 = scmp.eq.s32.totalorder %s30, 1
      %p231 = por %p229, %p230
      %p232 = scmp.ne.s32.totalorder %s223, %s224
      %p233 = scmp.eq.s32.totalorder %s30, 0
      %p234 = por %p232, %p233
      %p235 = scmp.ne.s32.totalorder %s223, %s224
      %p236 = scmp.eq.s32.totalorder %s31, 1
      %p237 = por %p235, %p236
      %p239 = scmp.ne.s32.totalorder %s224, %s238
      %p240 = scmp.eq.s32.totalorder %s31, 0
      %p241 = por %p239, %p240
      %s243 = sadd.s32 %s242, 1
      %p246 = scmp.eq.s32.totalorder %s25, 1
      %p247 = scmp.ne.s32.totalorder %s242, %s244
      %p248 = scmp.eq.s32.totalorder %s25, 0
      %p249 = por %p247, %p248
      %p250 = scmp.ne.s32.totalorder %s242, %s244
      %p251 = scmp.eq.s32.totalorder %s30, 1
      %p252 = por %p250, %p251
      %p253 = scmp.ne.s32.totalorder %s244, %s245
      %p254 = scmp.eq.s32.totalorder %s30, 0
      %p255 = por %p253, %p254
      %p256 = scmp.ne.s32.totalorder %s244, %s245
      %p257 = scmp.eq.s32.totalorder %s31, 1
      %p258 = por %p256, %p257
      %p260 = scmp.ne.s32.totalorder %s245, %s259
      %p261 = scmp.eq.s32.totalorder %s31, 0
      %p262 = por %p260, %p261
      %s264 = sadd.s32 %s263, 1
      %p267 = scmp.eq.s32.totalorder %s25, 1
      %p268 = scmp.ne.s32.totalorder %s263, %s265
      %p269 = scmp.eq.s32.totalorder %s25, 0
      %p270 = por %p268, %p269
      %p271 = scmp.ne.s32.totalorder %s263, %s265
      %p272 = scmp.eq.s32.totalorder %s30, 1
      %p273 = por %p271, %p272
      %p274 = scmp.ne.s32.totalorder %s265, %s266
      %p275 = scmp.eq.s32.totalorder %s30, 0
      %p276 = por %p274, %p275
      %p277 = scmp.ne.s32.totalorder %s265, %s266
      %p278 = scmp.eq.s32.totalorder %s31, 1
      %p279 = por %p277, %p278
      %p281 = scmp.ne.s32.totalorder %s266, %s280
      %p282 = scmp.eq.s32.totalorder %s31, 0
      %p283 = por %p281, %p282
      %s285 = sadd.s32 %s284, 1
      %p288 = scmp.eq.s32.totalorder %s25, 1
      %p289 = scmp.ne.s32.totalorder %s284, %s286
      %p290 = scmp.eq.s32.totalorder %s25, 0
      %p291 = por %p289, %p290
      %p292 = scmp.ne.s32.totalorder %s284, %s286
      %p293 = scmp.eq.s32.totalorder %s30, 1
      %p294 = por %p292, %p293
      %p295 = scmp.ne.s32.totalorder %s286, %s287
      %p296 = scmp.eq.s32.totalorder %s30, 0
      %p297 = por %p295, %p296
      %p298 = scmp.ne.s32.totalorder %s286, %s287
      %p299 = scmp.eq.s32.totalorder %s31, 1
      %p300 = por %p298, %p299
      %p302 = scmp.ne.s32.totalorder %s287, %s301
      %p303 = scmp.eq.s32.totalorder %s31, 0
      %p304 = por %p302, %p303
      %s306 = sadd.s32 %s305, 1
      %p309 = scmp.eq.s32.totalorder %s25, 1
      %p310 = scmp.ne.s32.totalorder %s305, %s307
      %p311 = scmp.eq.s32.totalorder %s25, 0
      %p312 = por %p310, %p311
      %p313 = scmp.ne.s32.totalorder %s305, %s307
      %p314 = scmp.eq.s32.totalorder %s30, 1
      %p315 = por %p313, %p314
      %p316 = scmp.ne.s32.totalorder %s307, %s308
      %p317 = scmp.eq.s32.totalorder %s30, 0
      %p318 = por %p316, %p317
      %p319 = scmp.ne.s32.totalorder %s307, %s308
      %p320 = scmp.eq.s32.totalorder %s31, 1
      %p321 = por %p319, %p320
      %p323 = scmp.ne.s32.totalorder %s308, %s322
      %p324 = scmp.eq.s32.totalorder %s31, 0
      %p325 = por %p323, %p324
      %s327 = sadd.s32 %s326, 1
      %p330 = scmp.eq.s32.totalorder %s25, 1
      %p331 = scmp.ne.s32.totalorder %s326, %s328
      %p332 = scmp.eq.s32.totalorder %s25, 0
      %p333 = por %p331, %p332
      %p334 = scmp.ne.s32.totalorder %s326, %s328
      %p335 = scmp.eq.s32.totalorder %s30, 1
      %p336 = por %p334, %p335
      %p337 = scmp.ne.s32.totalorder %s328, %s329
      %p338 = scmp.eq.s32.totalorder %s30, 0
      %p339 = por %p337, %p338
      %p340 = scmp.ne.s32.totalorder %s328, %s329
      %p341 = scmp.eq.s32.totalorder %s31, 1
      %p342 = por %p340, %p341
      %p344 = scmp.ne.s32.totalorder %s329, %s343
      %p345 = scmp.eq.s32.totalorder %s31, 0
      %p346 = por %p344, %p345
      %s348 = sadd.s32 %s347, 1
      %p351 = scmp.eq.s32.totalorder %s25, 1
      %p352 = scmp.ne.s32.totalorder %s347, %s349
      %p353 = scmp.eq.s32.totalorder %s25, 0
      %p354 = por %p352, %p353
      %p355 = scmp.ne.s32.totalorder %s347, %s349
      %p356 = scmp.eq.s32.totalorder %s30, 1
      %p357 = por %p355, %p356
      %p358 = scmp.ne.s32.totalorder %s349, %s350
      %p359 = scmp.eq.s32.totalorder %s30, 0
      %p360 = por %p358, %p359
      %p361 = scmp.ne.s32.totalorder %s349, %s350
      %p362 = scmp.eq.s32.totalorder %s31, 1
      %p363 = por %p361, %p362
      %p365 = scmp.ne.s32.totalorder %s350, %s364
      %p366 = scmp.eq.s32.totalorder %s31, 0
      %p367 = por %p365, %p366
      %s369 = sadd.s32 %s368, 1
      %p372 = scmp.eq.s32.totalorder %s25, 1
      %p373 = scmp.ne.s32.totalorder %s368, %s370
      %p374 = scmp.eq.s32.totalorder %s25, 0
      %p375 = por %p373, %p374
      %p376 = scmp.ne.s32.totalorder %s368, %s370
      %p377 = scmp.eq.s32.totalorder %s30, 1
      %p378 = por %p376, %p377
      %p379 = scmp.ne.s32.totalorder %s370, %s371
      %p380 = scmp.eq.s32.totalorder %s30, 0
      %p381 = por %p379, %p380
      %p382 = scmp.ne.s32.totalorder %s370, %s371
      %p383 = scmp.eq.s32.totalorder %s31, 1
      %p384 = por %p382, %p383
      %p386 = scmp.ne.s32.totalorder %s371, %s385
      %p387 = scmp.eq.s32.totalorder %s31, 0
      %p388 = por %p386, %p387
      %s389 = ssub.s32 %s25, %s32
      %p390 = scmp.eq.s32.totalorder %s389, 0
      %s392 = sadd.s32 %s391, 1
      %s393 = scalar_select %p390, %s391, %s392
      %p396 = pneg %p390
      %p397 = scmp.eq.s32.totalorder %s25, 1
      %p398 = por %p396, %p397
      %p399 = scmp.ne.s32.totalorder %s391, %s394
      %p400 = scmp.eq.s32.totalorder %s25, 0
      %p401 = por %p399, %p400
      %p402 = scmp.ne.s32.totalorder %s391, %s394
      %p403 = scmp.eq.s32.totalorder %s30, 1
      %p404 = por %p402, %p403
      %p405 = scmp.ne.s32.totalorder %s394, %s395
      %p406 = scmp.eq.s32.totalorder %s30, 0
      %p407 = por %p405, %p406
      %p408 = scmp.ne.s32.totalorder %s394, %s395
      %p409 = scmp.eq.s32.totalorder %s31, 1
      %p410 = por %p408, %p409
      %p412 = scmp.ne.s32.totalorder %s395, %s411
      %p413 = scmp.eq.s32.totalorder %s31, 0
      %p414 = por %p412, %p413
      %p415 = scmp.le.s32.totalorder 1, %s25
      %p416 = scmp.lt.s32.totalorder %s25, 3
      %p417 = pnand %p415, %p416
      %p418 = pneg %p417
      // Predicated region
      $region9: #{tpu_custom_call.1} parent=5 // pred_check
        _
      $region10: #{tpu_custom_call.1} parent=5 // pred_check_branch
        %420 = sbr.rel (%p417) target = $region12
      $region11: #{tpu_custom_call.1} parent=5 // pred_region
        %s421 = ssub.s32 %s25, 1
        // Predicated region
        $region13: #{tpu_custom_call.1} parent=11 // pred_check
          %p422 = pneg %p150
        $region14: #{tpu_custom_call.1} parent=11 // pred_check_branch
          %424 = sbr.rel (%p422) target = $region16
        $region15: #{tpu_custom_call.1} parent=11 // pred_region
          _
        $region16: #{tpu_custom_call.1} parent=11 // pred_fallthru
          _
        // Predicated region
        $region17: #{tpu_custom_call.1} parent=11 // pred_check
          %p425 = pneg %p171
        $region18: #{tpu_custom_call.1} parent=11 // pred_check_branch
          %427 = sbr.rel (%p425) target = $region20
        $region19: #{tpu_custom_call.1} parent=11 // pred_region
          _
        $region20: #{tpu_custom_call.1} parent=11 // pred_fallthru
          _
        // Predicated region
        $region21: #{tpu_custom_call.1} parent=11 // pred_check
          %p428 = pneg %p192
        $region22: #{tpu_custom_call.1} parent=11 // pred_check_branch
          %430 = sbr.rel (%p428) target = $region24
        $region23: #{tpu_custom_call.1} parent=11 // pred_region
          _
        $region24: #{tpu_custom_call.1} parent=11 // pred_fallthru
          _
        // Predicated region
        $region25: #{tpu_custom_call.1} parent=11 // pred_check
          %p431 = pneg %p213
        $region26: #{tpu_custom_call.1} parent=11 // pred_check_branch
          %433 = sbr.rel (%p431) target = $region28
        $region27: #{tpu_custom_call.1} parent=11 // pred_region
          _
        $region28: #{tpu_custom_call.1} parent=11 // pred_fallthru
          _
        // Predicated region
        $region29: #{tpu_custom_call.1} parent=11 // pred_check
          %p434 = pneg %p234
        $region30: #{tpu_custom_call.1} parent=11 // pred_check_branch
          %436 = sbr.rel (%p434) target = $region32
        $region31: #{tpu_custom_call.1} parent=11 // pred_region
          _
        $region32: #{tpu_custom_call.1} parent=11 // pred_fallthru
          _
        // Predicated region
        $region33: #{tpu_custom_call.1} parent=11 // pred_check
          %p437 = pneg %p255
        $region34: #{tpu_custom_call.1} parent=11 // pred_check_branch
          %439 = sbr.rel (%p437) target = $region36
        $region35: #{tpu_custom_call.1} parent=11 // pred_region
          _
        $region36: #{tpu_custom_call.1} parent=11 // pred_fallthru
          _
        // Predicated region
        $region37: #{tpu_custom_call.1} parent=11 // pred_check
          %p440 = pneg %p276
        $region38: #{tpu_custom_call.1} parent=11 // pred_check_branch
          %442 = sbr.rel (%p440) target = $region40
        $region39: #{tpu_custom_call.1} parent=11 // pred_region
          _
        $region40: #{tpu_custom_call.1} parent=11 // pred_fallthru
          _
        // Predicated region
        $region41: #{tpu_custom_call.1} parent=11 // pred_check
          %p443 = pneg %p297
        $region42: #{tpu_custom_call.1} parent=11 // pred_check_branch
          %445 = sbr.rel (%p443) target = $region44
        $region43: #{tpu_custom_call.1} parent=11 // pred_region
          _
        $region44: #{tpu_custom_call.1} parent=11 // pred_fallthru
          _
        // Predicated region
        $region45: #{tpu_custom_call.1} parent=11 // pred_check
          %p446 = pneg %p318
        $region46: #{tpu_custom_call.1} parent=11 // pred_check_branch
          %448 = sbr.rel (%p446) target = $region48
        $region47: #{tpu_custom_call.1} parent=11 // pred_region
          _
        $region48: #{tpu_custom_call.1} parent=11 // pred_fallthru
          _
        // Predicated region
        $region49: #{tpu_custom_call.1} parent=11 // pred_check
          %p449 = pneg %p339
        $region50: #{tpu_custom_call.1} parent=11 // pred_check_branch
          %451 = sbr.rel (%p449) target = $region52
        $region51: #{tpu_custom_call.1} parent=11 // pred_region
          _
        $region52: #{tpu_custom_call.1} parent=11 // pred_fallthru
          _
        // Predicated region
        $region53: #{tpu_custom_call.1} parent=11 // pred_check
          %p452 = pneg %p360
        $region54: #{tpu_custom_call.1} parent=11 // pred_check_branch
          %454 = sbr.rel (%p452) target = $region56
        $region55: #{tpu_custom_call.1} parent=11 // pred_region
          _
        $region56: #{tpu_custom_call.1} parent=11 // pred_fallthru
          _
        // Predicated region
        $region57: #{tpu_custom_call.1} parent=11 // pred_check
          %p455 = pneg %p381
        $region58: #{tpu_custom_call.1} parent=11 // pred_check_branch
          %457 = sbr.rel (%p455) target = $region60
        $region59: #{tpu_custom_call.1} parent=11 // pred_region
          _
        $region60: #{tpu_custom_call.1} parent=11 // pred_fallthru
          _
      $region12: #{tpu_custom_call.1} parent=5 // pred_fallthru
        _
      %p458 = scmp.lt.s32.totalorder %s25, 2
      // Predicated region
      $region61: #{tpu_custom_call.1} parent=5 // pred_check
        %p459 = pneg %p458
      $region62: #{tpu_custom_call.1} parent=5 // pred_check_branch
        %461 = sbr.rel (%p459) target = $region64
      $region63: #{tpu_custom_call.1} parent=5 // pred_region
        // Predicated region
        $region65: #{tpu_custom_call.1} parent=63 // pred_check
          %p462 = pneg %p45
        $region66: #{tpu_custom_call.1} parent=63 // pred_check_branch
          %464 = sbr.rel (%p462) target = $region68
        $region67: #{tpu_custom_call.1} parent=63 // pred_region
          %p465 = scmp.lt.s32.totalorder %s25, 1
          %s466 = scalar_select %p465, %s25, 1
          %s467 = smul.addr %s466, 4
          %s468 = smul.addr %s467, 8
          %s469 = scalar_lea.vmem %s0, %s468
        $region68: #{tpu_custom_call.1} parent=63 // pred_fallthru
          _
        // Predicated region
        $region69: #{tpu_custom_call.1} parent=63 // pred_check
          %p470 = pneg %p71
        $region70: #{tpu_custom_call.1} parent=63 // pred_check_branch
          %472 = sbr.rel (%p470) target = $region72
        $region71: #{tpu_custom_call.1} parent=63 // pred_region
          %p473 = scmp.lt.s32.totalorder %s25, 1
          %s474 = scalar_select %p473, %s25, 1
          %s475 = scalar_lea.vmem %s1, %s474
        $region72: #{tpu_custom_call.1} parent=63 // pred_fallthru
          _
        // Predicated region
        $region73: #{tpu_custom_call.1} parent=63 // pred_check
          %p476 = pneg %p97
        $region74: #{tpu_custom_call.1} parent=63 // pred_check_branch
          %478 = sbr.rel (%p476) target = $region76
        $region75: #{tpu_custom_call.1} parent=63 // pred_region
          %p479 = scmp.lt.s32.totalorder %s25, 1
          %s480 = scalar_select %p479, %s25, 1
          %s481 = scalar_lea.vmem %s2, %s480
        $region76: #{tpu_custom_call.1} parent=63 // pred_fallthru
          _
        // Predicated region
        $region77: #{tpu_custom_call.1} parent=63 // pred_check
          %p482 = pneg %p123
        $region78: #{tpu_custom_call.1} parent=63 // pred_check_branch
          %484 = sbr.rel (%p482) target = $region80
        $region79: #{tpu_custom_call.1} parent=63 // pred_region
          %p485 = scmp.lt.s32.totalorder %s25, 1
          %s486 = scalar_select %p485, %s25, 1
          %s487 = scalar_lea.vmem %s3, %s486
        $region80: #{tpu_custom_call.1} parent=63 // pred_fallthru
          _
      $region64: #{tpu_custom_call.1} parent=5 // pred_fallthru
        _
      %p488 = scmp.le.s32.totalorder 1, %s25
      %p489 = scmp.lt.s32.totalorder %s25, 3
      %p490 = pnand %p488, %p489
      %p491 = pneg %p490
      // Predicated region
      $region81: #{tpu_custom_call.1} parent=5 // pred_check
        _
      $region82: #{tpu_custom_call.1} parent=5 // pred_check_branch
        %493 = sbr.rel (%p490) target = $region84
      $region83: #{tpu_custom_call.1} parent=5 // pred_region
        %s494 = ssub.s32 %s25, 1
        %p495 = scmp.lt.s32.totalorder %s30, 1
        %s496 = scalar_select %p495, %s30, 1
        %s497 = smul.addr %s496, 4
        %s498 = smul.addr %s497, 8
        %s499 = scalar_lea.vmem %s0, %s498
        %p500 = pneg %p51
        %p501 = pneg %p48
        %p502 = scmp.lt.s32.totalorder %s30, 1
        %s503 = scalar_select %p502, %s30, 1
        %s504 = scalar_lea.vmem %s1, %s503
        %p505 = pneg %p77
        %p506 = pneg %p74
        %p507 = scmp.lt.s32.totalorder %s30, 1
        %s508 = scalar_select %p507, %s30, 1
        %s509 = scalar_lea.vmem %s2, %s508
        %p510 = pneg %p103
        %p511 = pneg %p100
        %p512 = scmp.lt.s32.totalorder %s30, 1
        %s513 = scalar_select %p512, %s30, 1
        %s514 = scalar_lea.vmem %s3, %s513
        %p515 = pneg %p129
        %p516 = pneg %p126
        %p517 = pneg %p150
        %p518 = pneg %p147
        %p519 = pneg %p171
        %p520 = pneg %p168
        %p521 = pneg %p192
        %p522 = pneg %p189
        %p523 = pneg %p213
        %p524 = pneg %p210
        %p525 = pneg %p234
        %p526 = pneg %p231
        %p527 = pneg %p255
        %p528 = pneg %p252
        %p529 = pneg %p276
        %p530 = pneg %p273
        %p531 = pneg %p297
        %p532 = pneg %p294
        %p533 = pneg %p318
        %p534 = pneg %p315
        %p535 = pneg %p339
        %p536 = pneg %p336
        %p537 = pneg %p360
        %p538 = pneg %p357
        %p539 = pneg %p381
        %p540 = pneg %p378
        %p541 = pneg %p407
        %p542 = pneg %p404
        %s543 = sand.u32 %s394, 1
        %s544 = scalar_lea.sflag [#allocation3], %s543
        %s545 = sand.u32 %s394, 1
        %s546 = smul.addr %s545, 16
        %s547 = scalar_lea.vmem [#allocation2], %s546
        %p548 = scmp.lt.s32.totalorder %s30, 1
        %s549 = scalar_select %p548, %s30, 1
        %s550 = smul.addr %s549, 4
        %s551 = smul.addr %s550, 8
        %s552 = scalar_lea.vmem %s0, %s551
        %p553 = scmp.lt.s32.totalorder %s30, 1
        %s554 = scalar_select %p553, %s30, 1
        %s555 = scalar_lea.vmem %s1, %s554
        %p556 = scmp.lt.s32.totalorder %s30, 1
        %s557 = scalar_select %p556, %s30, 1
        %s558 = scalar_lea.vmem %s2, %s557
        %p559 = scmp.lt.s32.totalorder %s30, 1
        %s560 = scalar_select %p559, %s30, 1
        %s561 = scalar_lea.vmem %s3, %s560
        %v562 = vld [vmem:[%s552] sm:$0xff]
        %v563 = vld [vmem:[%s552 + $0x8] sm:$0xff]
        %v564 = vld [vmem:[%s552 + $0x10] sm:$0xff]
        %v565 = vld [vmem:[%s552 + $0x18] sm:$0xff]
        %v566 = vld [vmem:[%s555] sm:$0x1]
        %v567 = vld [vmem:[%s558] sm:$0x1]
        %v568 = vld [vmem:[%s561] sm:$0x1]
        %v569 = vrcp.pop %v568
        %v570 = vmul.f32 %v568, %v569
        %v571 = vsub.f32 1.0, %v570
        %v572 = vmul.f32 %v569, %v571
        %v573 = vadd.f32 %v569, %v572
        %vm574 = vweird.f32 %v568
        %vm575 = vweird.f32 %v569
        %vm576 = vmor %vm574, %vm575
        %v577 = vsel %vm576, %v569, %v573
        %v578 = vand.u32 2147483647, %v568
        %vm579 = vcmp.eq.f32.partialorder %v578, 8.507059e+37
        %v580 = vand.u32 %v568, 2147483648
        %v581 = vor.u32 1.1754944e-38, %v580
        %v582 = vsel %vm579, %v581, %v577
        %v583 = vmul.f32 1.0, %v582
        %v584 = vrsqrt.pop %v568
        %v585 = vmul.f32 %v584, %v568
        %v586 = vmul.f32 %v585, %v584
        %v587 = vmul.f32 0.5, %v586
        %v588 = vsub.f32 1.5, %v587
        %v589 = vmul.f32 %v584, %v588
        %vm590 = vweird.f32 %v568
        %vm591 = vweird.f32 %v584
        %vm592 = vmor %vm590, %vm591
        %v593 = vsel %vm592, %v584, %v589
        %v595 = vperm.slane %v566, 0
        %vm596 = vcmask 64512
        %v597 = vsel %vm596, %v595, 0
        %599 = vmatpush.msra.mxu0 0.0
        %600 = vmatpush.msra.mxu0 0.0
        %601 = vmatpush.msra.mxu0 0.0
        %602 = vmatpush.msra.mxu0 0.0
        %603 = vmatpush.msra.mxu0 0.0
        %604 = vmatpush.msra.mxu0 0.0
        %605 = vmatpush.msra.mxu0 0.0
        %606 = vmatpush.msra.mxu0 0.0
        %607 = vmatpush.msra.mxu0 0.0
        %608 = vmatpush.msra.mxu0 0.0
        %609 = vmatpush.msra.mxu0 0.0
        %610 = vmatpush.msra.mxu0 0.0
        %611 = vmatpush.msra.mxu0 0.0
        %612 = vmatpush.msra.mxu0 0.0
        %613 = vmatpush.msra.mxu0 0.0
        %614 = vmatpush.msra.mxu0 %v562
        %615 = vmatmul.f32.gmra.mxu0 %v597
        %v616 = vpop.f32.mrf.mxu0
        %v617 = vadd.f32 0.0, %v616
        %618 = vmatmul.f32.gmra.mxu0 %v597
        %v619 = vpop.f32.mrf.mxu0
        %v620 = vadd.f32 0.0, %v619
        %621 = vdwg.mxu0
        %v623 = vperm.slane %v583, 0
        %624 = vset.pattern.permute.xlu0 0
        %625 = vperm.xlu0 %624, %v623
        %v626 = vpop.permute.xlu0 %625
        %v628 = vmul.f32 %v617, %v626
        %v629 = vmul.f32 %v620, %v626
        %v630 = vld [vmem:[%s4] sm:$0xff]
        %v631 = vld [vmem:[%s4 + $0x8] sm:$0xff]
        %v632 = vld [vmem:[%s4 + $0x10] sm:$0xff]
        %v633 = vld [vmem:[%s4 + $0x18] sm:$0xff]
        %v634 = vld [vmem:[%s4 + $0x20] sm:$0xff]
        %v635 = vld [vmem:[%s4 + $0x28] sm:$0xff]
        %v636 = vld [vmem:[%s4 + $0x30] sm:$0xff]
        %v637 = vld [vmem:[%s4 + $0x38] sm:$0xff]
        %v638 = vld [vmem:[%s4 + $0x40] sm:$0xff]
        %v639 = vld [vmem:[%s4 + $0x48] sm:$0xff]
        %v640 = vld [vmem:[%s4 + $0x50] sm:$0xff]
        %v641 = vld [vmem:[%s4 + $0x58] sm:$0xff]
        %v642 = vld [vmem:[%s4 + $0x60] sm:$0xff]
        %v643 = vld [vmem:[%s4 + $0x68] sm:$0xff]
        %v644 = vld [vmem:[%s4 + $0x70] sm:$0xff]
        %v645 = vld [vmem:[%s4 + $0x78] sm:$0xff]
        %v646 = vld [vmem:[%s4 + $0x80] sm:$0xff]
        %v647 = vld [vmem:[%s4 + $0x88] sm:$0xff]
        %v648 = vld [vmem:[%s4 + $0x90] sm:$0xff]
        %v649 = vld [vmem:[%s4 + $0x98] sm:$0xff]
        %v650 = vld [vmem:[%s4 + $0xa0] sm:$0xff]
        %v651 = vld [vmem:[%s4 + $0xa8] sm:$0xff]
        %v652 = vld [vmem:[%s4 + $0xb0] sm:$0xff]
        %v653 = vld [vmem:[%s4 + $0xb8] sm:$0xff]
        %v654 = vld [vmem:[%s4 + $0xc0] sm:$0xff]
        %v655 = vld [vmem:[%s4 + $0xc8] sm:$0xff]
        %v656 = vld [vmem:[%s4 + $0xd0] sm:$0xff]
        %v657 = vld [vmem:[%s4 + $0xd8] sm:$0xff]
        %v658 = vld [vmem:[%s4 + $0xe0] sm:$0xff]
        %v659 = vld [vmem:[%s4 + $0xe8] sm:$0xff]
        %v660 = vld [vmem:[%s4 + $0xf0] sm:$0xff]
        %v661 = vld [vmem:[%s4 + $0xf8] sm:$0xff]
        %v662 = vld [vmem:[%s4 + $0x100] sm:$0xff]
        %v663 = vld [vmem:[%s4 + $0x108] sm:$0xff]
        %v664 = vld [vmem:[%s4 + $0x110] sm:$0xff]
        %v665 = vld [vmem:[%s4 + $0x118] sm:$0xff]
        %v666 = vld [vmem:[%s4 + $0x120] sm:$0xff]
        %v667 = vld [vmem:[%s4 + $0x128] sm:$0xff]
        %v668 = vld [vmem:[%s4 + $0x130] sm:$0xff]
        %v669 = vld [vmem:[%s4 + $0x138] sm:$0xff]
        %v670 = vld [vmem:[%s4 + $0x140] sm:$0xff]
        %v671 = vld [vmem:[%s4 + $0x148] sm:$0xff]
        %v672 = vld [vmem:[%s4 + $0x150] sm:$0xff]
        %v673 = vld [vmem:[%s4 + $0x158] sm:$0xff]
        %v674 = vld [vmem:[%s4 + $0x160] sm:$0xff]
        %v675 = vld [vmem:[%s4 + $0x168] sm:$0xff]
        %v676 = vld [vmem:[%s4 + $0x170] sm:$0xff]
        %v677 = vld [vmem:[%s4 + $0x178] sm:$0xff]
        %v678 = vld [vmem:[%s4 + $0x180] sm:$0xff]
        %v679 = vld [vmem:[%s4 + $0x188] sm:$0xff]
        %v680 = vld [vmem:[%s4 + $0x190] sm:$0xff]
        %v681 = vld [vmem:[%s4 + $0x198] sm:$0xff]
        %v682 = vld [vmem:[%s4 + $0x1a0] sm:$0xff]
        %v683 = vld [vmem:[%s4 + $0x1a8] sm:$0xff]
        %v684 = vld [vmem:[%s4 + $0x1b0] sm:$0xff]
        %v685 = vld [vmem:[%s4 + $0x1b8] sm:$0xff]
        %v686 = vld [vmem:[%s4 + $0x1c0] sm:$0xff]
        %v687 = vld [vmem:[%s4 + $0x1c8] sm:$0xff]
        %v688 = vld [vmem:[%s4 + $0x1d0] sm:$0xff]
        %v689 = vld [vmem:[%s4 + $0x1d8] sm:$0xff]
        %v690 = vld [vmem:[%s4 + $0x1e0] sm:$0xff]
        %v691 = vld [vmem:[%s4 + $0x1e8] sm:$0xff]
        %v692 = vld [vmem:[%s4 + $0x1f0] sm:$0xff]
        %v693 = vld [vmem:[%s4 + $0x1f8] sm:$0xff]
        %vm694 = vcmask 261120
        %v696 = vsel %vm694, %v617, 0
        %v699 = vsel %vm694, %v620, 0
        %701 = vmatpush.msra.mxu0 0.0
        %702 = vmatpush.msra.mxu0 0.0
        %703 = vmatpush.msra.mxu0 0.0
        %704 = vmatpush.msra.mxu0 0.0
        %705 = vmatpush.msra.mxu0 0.0
        %706 = vmatpush.msra.mxu0 0.0
        %707 = vmatpush.msra.mxu0 0.0
        %708 = vmatpush.msra.mxu0 0.0
        %709 = vmatpush.msra.mxu0 0.0
        %710 = vmatpush.msra.mxu0 0.0
        %711 = vmatpush.msra.mxu0 0.0
        %712 = vmatpush.msra.mxu0 0.0
        %713 = vmatpush.msra.mxu0 %v686
        %714 = vmatpush.msra.mxu0 %v678
        %715 = vmatpush.msra.mxu0 %v670
        %716 = vmatpush.msra.mxu0 %v662
        %717 = vmatmul.f32.gmra.mxu0 %v696
        %v718 = vpop.f32.mrf.mxu0
        %v719 = vadd.f32 0.0, %v718
        %720 = vmatmul.f32.gmra.mxu0 %v699
        %v721 = vpop.f32.mrf.mxu0
        %v722 = vadd.f32 0.0, %v721
        %723 = vdwg.mxu0
        %724 = vmatpush.msra.mxu0 0.0
        %725 = vmatpush.msra.mxu0 0.0
        %726 = vmatpush.msra.mxu0 0.0
        %727 = vmatpush.msra.mxu0 0.0
        %728 = vmatpush.msra.mxu0 0.0
        %729 = vmatpush.msra.mxu0 0.0
        %730 = vmatpush.msra.mxu0 0.0
        %731 = vmatpush.msra.mxu0 0.0
        %732 = vmatpush.msra.mxu0 0.0
        %733 = vmatpush.msra.mxu0 0.0
        %734 = vmatpush.msra.mxu0 0.0
        %735 = vmatpush.msra.mxu0 0.0
        %736 = vmatpush.msra.mxu0 %v687
        %737 = vmatpush.msra.mxu0 %v679
        %738 = vmatpush.msra.mxu0 %v671
        %739 = vmatpush.msra.mxu0 %v663
        %740 = vmatmul.f32.gmra.mxu0 %v696
        %v741 = vpop.f32.mrf.mxu0
        %v742 = vadd.f32 0.0, %v741
        %743 = vmatmul.f32.gmra.mxu0 %v699
        %v744 = vpop.f32.mrf.mxu0
        %v745 = vadd.f32 0.0, %v744
        %746 = vdwg.mxu0
        %747 = vmatpush.msra.mxu0 0.0
        %748 = vmatpush.msra.mxu0 0.0
        %749 = vmatpush.msra.mxu0 0.0
        %750 = vmatpush.msra.mxu0 0.0
        %751 = vmatpush.msra.mxu0 0.0
        %752 = vmatpush.msra.mxu0 0.0
        %753 = vmatpush.msra.mxu0 0.0
        %754 = vmatpush.msra.mxu0 0.0
        %755 = vmatpush.msra.mxu0 0.0
        %756 = vmatpush.msra.mxu0 0.0
        %757 = vmatpush.msra.mxu0 0.0
        %758 = vmatpush.msra.mxu0 0.0
        %759 = vmatpush.msra.mxu0 %v688
        %760 = vmatpush.msra.mxu0 %v680
        %761 = vmatpush.msra.mxu0 %v672
        %762 = vmatpush.msra.mxu0 %v664
        %763 = vmatmul.f32.gmra.mxu0 %v696
        %v764 = vpop.f32.mrf.mxu0
        %v765 = vadd.f32 0.0, %v764
        %766 = vmatmul.f32.gmra.mxu0 %v699
        %v767 = vpop.f32.mrf.mxu0
        %v768 = vadd.f32 0.0, %v767
        %769 = vdwg.mxu0
        %770 = vmatpush.msra.mxu0 0.0
        %771 = vmatpush.msra.mxu0 0.0
        %772 = vmatpush.msra.mxu0 0.0
        %773 = vmatpush.msra.mxu0 0.0
        %774 = vmatpush.msra.mxu0 0.0
        %775 = vmatpush.msra.mxu0 0.0
        %776 = vmatpush.msra.mxu0 0.0
        %777 = vmatpush.msra.mxu0 0.0
        %778 = vmatpush.msra.mxu0 0.0
        %779 = vmatpush.msra.mxu0 0.0
        %780 = vmatpush.msra.mxu0 0.0
        %781 = vmatpush.msra.mxu0 0.0
        %782 = vmatpush.msra.mxu0 %v689
        %783 = vmatpush.msra.mxu0 %v681
        %784 = vmatpush.msra.mxu0 %v673
        %785 = vmatpush.msra.mxu0 %v665
        %786 = vmatmul.f32.gmra.mxu0 %v696
        %v787 = vpop.f32.mrf.mxu0
        %v788 = vadd.f32 0.0, %v787
        %789 = vmatmul.f32.gmra.mxu0 %v699
        %v790 = vpop.f32.mrf.mxu0
        %v791 = vadd.f32 0.0, %v790
        %792 = vdwg.mxu0
        %793 = vmatpush.msra.mxu0 0.0
        %794 = vmatpush.msra.mxu0 0.0
        %795 = vmatpush.msra.mxu0 0.0
        %796 = vmatpush.msra.mxu0 0.0
        %797 = vmatpush.msra.mxu0 0.0
        %798 = vmatpush.msra.mxu0 0.0
        %799 = vmatpush.msra.mxu0 0.0
        %800 = vmatpush.msra.mxu0 0.0
        %801 = vmatpush.msra.mxu0 0.0
        %802 = vmatpush.msra.mxu0 0.0
        %803 = vmatpush.msra.mxu0 0.0
        %804 = vmatpush.msra.mxu0 0.0
        %805 = vmatpush.msra.mxu0 %v690
        %806 = vmatpush.msra.mxu0 %v682
        %807 = vmatpush.msra.mxu0 %v674
        %808 = vmatpush.msra.mxu0 %v666
        %809 = vmatmul.f32.gmra.mxu0 %v696
        %v810 = vpop.f32.mrf.mxu0
        %v811 = vadd.f32 0.0, %v810
        %812 = vmatmul.f32.gmra.mxu0 %v699
        %v813 = vpop.f32.mrf.mxu0
        %v814 = vadd.f32 0.0, %v813
        %815 = vdwg.mxu0
        %816 = vmatpush.msra.mxu0 0.0
        %817 = vmatpush.msra.mxu0 0.0
        %818 = vmatpush.msra.mxu0 0.0
        %819 = vmatpush.msra.mxu0 0.0
        %820 = vmatpush.msra.mxu0 0.0
        %821 = vmatpush.msra.mxu0 0.0
        %822 = vmatpush.msra.mxu0 0.0
        %823 = vmatpush.msra.mxu0 0.0
        %824 = vmatpush.msra.mxu0 0.0
        %825 = vmatpush.msra.mxu0 0.0
        %826 = vmatpush.msra.mxu0 0.0
        %827 = vmatpush.msra.mxu0 0.0
        %828 = vmatpush.msra.mxu0 %v691
        %829 = vmatpush.msra.mxu0 %v683
        %830 = vmatpush.msra.mxu0 %v675
        %831 = vmatpush.msra.mxu0 %v667
        %832 = vmatmul.f32.gmra.mxu0 %v696
        %v833 = vpop.f32.mrf.mxu0
        %v834 = vadd.f32 0.0, %v833
        %835 = vmatmul.f32.gmra.mxu0 %v699
        %v836 = vpop.f32.mrf.mxu0
        %v837 = vadd.f32 0.0, %v836
        %838 = vdwg.mxu0
        %839 = vmatpush.msra.mxu0 0.0
        %840 = vmatpush.msra.mxu0 0.0
        %841 = vmatpush.msra.mxu0 0.0
        %842 = vmatpush.msra.mxu0 0.0
        %843 = vmatpush.msra.mxu0 0.0
        %844 = vmatpush.msra.mxu0 0.0
        %845 = vmatpush.msra.mxu0 0.0
        %846 = vmatpush.msra.mxu0 0.0
        %847 = vmatpush.msra.mxu0 0.0
        %848 = vmatpush.msra.mxu0 0.0
        %849 = vmatpush.msra.mxu0 0.0
        %850 = vmatpush.msra.mxu0 0.0
        %851 = vmatpush.msra.mxu0 %v692
        %852 = vmatpush.msra.mxu0 %v684
        %853 = vmatpush.msra.mxu0 %v676
        %854 = vmatpush.msra.mxu0 %v668
        %855 = vmatmul.f32.gmra.mxu0 %v696
        %v856 = vpop.f32.mrf.mxu0
        %v857 = vadd.f32 0.0, %v856
        %858 = vmatmul.f32.gmra.mxu0 %v699
        %v859 = vpop.f32.mrf.mxu0
        %v860 = vadd.f32 0.0, %v859
        %861 = vdwg.mxu0
        %862 = vmatpush.msra.mxu0 0.0
        %863 = vmatpush.msra.mxu0 0.0
        %864 = vmatpush.msra.mxu0 0.0
        %865 = vmatpush.msra.mxu0 0.0
        %866 = vmatpush.msra.mxu0 0.0
        %867 = vmatpush.msra.mxu0 0.0
        %868 = vmatpush.msra.mxu0 0.0
        %869 = vmatpush.msra.mxu0 0.0
        %870 = vmatpush.msra.mxu0 0.0
        %871 = vmatpush.msra.mxu0 0.0
        %872 = vmatpush.msra.mxu0 0.0
        %873 = vmatpush.msra.mxu0 0.0
        %874 = vmatpush.msra.mxu0 %v693
        %875 = vmatpush.msra.mxu0 %v685
        %876 = vmatpush.msra.mxu0 %v677
        %877 = vmatpush.msra.mxu0 %v669
        %878 = vmatmul.f32.gmra.mxu0 %v696
        %v879 = vpop.f32.mrf.mxu0
        %v880 = vadd.f32 0.0, %v879
        %881 = vmatmul.f32.gmra.mxu0 %v699
        %v882 = vpop.f32.mrf.mxu0
        %v883 = vadd.f32 0.0, %v882
        %884 = vdwg.mxu0
        %v886 = vsel %vm694, %v628, 0
        %v889 = vsel %vm694, %v629, 0
        %891 = vmatpush.msra.mxu0 0.0
        %892 = vmatpush.msra.mxu0 0.0
        %893 = vmatpush.msra.mxu0 0.0
        %894 = vmatpush.msra.mxu0 0.0
        %895 = vmatpush.msra.mxu0 0.0
        %896 = vmatpush.msra.mxu0 0.0
        %897 = vmatpush.msra.mxu0 0.0
        %898 = vmatpush.msra.mxu0 0.0
        %899 = vmatpush.msra.mxu0 0.0
        %900 = vmatpush.msra.mxu0 0.0
        %901 = vmatpush.msra.mxu0 0.0
        %902 = vmatpush.msra.mxu0 0.0
        %903 = vmatpush.msra.mxu0 %v654
        %904 = vmatpush.msra.mxu0 %v646
        %905 = vmatpush.msra.mxu0 %v638
        %906 = vmatpush.msra.mxu0 %v630
        %907 = vmatmul.f32.gmra.mxu0 %v886
        %v908 = vpop.f32.mrf.mxu0
        %v909 = vadd.f32 %v719, %v908
        %910 = vmatmul.f32.gmra.mxu0 %v889
        %v911 = vpop.f32.mrf.mxu0
        %v912 = vadd.f32 %v722, %v911
        %913 = vdwg.mxu0
        %914 = vmatpush.msra.mxu0 0.0
        %915 = vmatpush.msra.mxu0 0.0
        %916 = vmatpush.msra.mxu0 0.0
        %917 = vmatpush.msra.mxu0 0.0
        %918 = vmatpush.msra.mxu0 0.0
        %919 = vmatpush.msra.mxu0 0.0
        %920 = vmatpush.msra.mxu0 0.0
        %921 = vmatpush.msra.mxu0 0.0
        %922 = vmatpush.msra.mxu0 0.0
        %923 = vmatpush.msra.mxu0 0.0
        %924 = vmatpush.msra.mxu0 0.0
        %925 = vmatpush.msra.mxu0 0.0
        %926 = vmatpush.msra.mxu0 %v655
        %927 = vmatpush.msra.mxu0 %v647
        %928 = vmatpush.msra.mxu0 %v639
        %929 = vmatpush.msra.mxu0 %v631
        %930 = vmatmul.f32.gmra.mxu0 %v886
        %v931 = vpop.f32.mrf.mxu0
        %v932 = vadd.f32 %v742, %v931
        %933 = vmatmul.f32.gmra.mxu0 %v889
        %v934 = vpop.f32.mrf.mxu0
        %v935 = vadd.f32 %v745, %v934
        %936 = vdwg.mxu0
        %937 = vmatpush.msra.mxu0 0.0
        %938 = vmatpush.msra.mxu0 0.0
        %939 = vmatpush.msra.mxu0 0.0
        %940 = vmatpush.msra.mxu0 0.0
        %941 = vmatpush.msra.mxu0 0.0
        %942 = vmatpush.msra.mxu0 0.0
        %943 = vmatpush.msra.mxu0 0.0
        %944 = vmatpush.msra.mxu0 0.0
        %945 = vmatpush.msra.mxu0 0.0
        %946 = vmatpush.msra.mxu0 0.0
        %947 = vmatpush.msra.mxu0 0.0
        %948 = vmatpush.msra.mxu0 0.0
        %949 = vmatpush.msra.mxu0 %v656
        %950 = vmatpush.msra.mxu0 %v648
        %951 = vmatpush.msra.mxu0 %v640
        %952 = vmatpush.msra.mxu0 %v632
        %953 = vmatmul.f32.gmra.mxu0 %v886
        %v954 = vpop.f32.mrf.mxu0
        %v955 = vadd.f32 %v765, %v954
        %956 = vmatmul.f32.gmra.mxu0 %v889
        %v957 = vpop.f32.mrf.mxu0
        %v958 = vadd.f32 %v768, %v957
        %959 = vdwg.mxu0
        %960 = vmatpush.msra.mxu0 0.0
        %961 = vmatpush.msra.mxu0 0.0
        %962 = vmatpush.msra.mxu0 0.0
        %963 = vmatpush.msra.mxu0 0.0
        %964 = vmatpush.msra.mxu0 0.0
        %965 = vmatpush.msra.mxu0 0.0
        %966 = vmatpush.msra.mxu0 0.0
        %967 = vmatpush.msra.mxu0 0.0
        %968 = vmatpush.msra.mxu0 0.0
        %969 = vmatpush.msra.mxu0 0.0
        %970 = vmatpush.msra.mxu0 0.0
        %971 = vmatpush.msra.mxu0 0.0
        %972 = vmatpush.msra.mxu0 %v657
        %973 = vmatpush.msra.mxu0 %v649
        %974 = vmatpush.msra.mxu0 %v641
        %975 = vmatpush.msra.mxu0 %v633
        %976 = vmatmul.f32.gmra.mxu0 %v886
        %v977 = vpop.f32.mrf.mxu0
        %v978 = vadd.f32 %v788, %v977
        %979 = vmatmul.f32.gmra.mxu0 %v889
        %v980 = vpop.f32.mrf.mxu0
        %v981 = vadd.f32 %v791, %v980
        %982 = vdwg.mxu0
        %983 = vmatpush.msra.mxu0 0.0
        %984 = vmatpush.msra.mxu0 0.0
        %985 = vmatpush.msra.mxu0 0.0
        %986 = vmatpush.msra.mxu0 0.0
        %987 = vmatpush.msra.mxu0 0.0
        %988 = vmatpush.msra.mxu0 0.0
        %989 = vmatpush.msra.mxu0 0.0
        %990 = vmatpush.msra.mxu0 0.0
        %991 = vmatpush.msra.mxu0 0.0
        %992 = vmatpush.msra.mxu0 0.0
        %993 = vmatpush.msra.mxu0 0.0
        %994 = vmatpush.msra.mxu0 0.0
        %995 = vmatpush.msra.mxu0 %v658
        %996 = vmatpush.msra.mxu0 %v650
        %997 = vmatpush.msra.mxu0 %v642
        %998 = vmatpush.msra.mxu0 %v634
        %999 = vmatmul.f32.gmra.mxu0 %v886
        %v1000 = vpop.f32.mrf.mxu0
        %v1001 = vadd.f32 %v811, %v1000
        %1002 = vmatmul.f32.gmra.mxu0 %v889
        %v1003 = vpop.f32.mrf.mxu0
        %v1004 = vadd.f32 %v814, %v1003
        %1005 = vdwg.mxu0
        %1006 = vmatpush.msra.mxu0 0.0
        %1007 = vmatpush.msra.mxu0 0.0
        %1008 = vmatpush.msra.mxu0 0.0
        %1009 = vmatpush.msra.mxu0 0.0
        %1010 = vmatpush.msra.mxu0 0.0
        %1011 = vmatpush.msra.mxu0 0.0
        %1012 = vmatpush.msra.mxu0 0.0
        %1013 = vmatpush.msra.mxu0 0.0
        %1014 = vmatpush.msra.mxu0 0.0
        %1015 = vmatpush.msra.mxu0 0.0
        %1016 = vmatpush.msra.mxu0 0.0
        %1017 = vmatpush.msra.mxu0 0.0
        %1018 = vmatpush.msra.mxu0 %v659
        %1019 = vmatpush.msra.mxu0 %v651
        %1020 = vmatpush.msra.mxu0 %v643
        %1021 = vmatpush.msra.mxu0 %v635
        %1022 = vmatmul.f32.gmra.mxu0 %v886
        %v1023 = vpop.f32.mrf.mxu0
        %v1024 = vadd.f32 %v834, %v1023
        %1025 = vmatmul.f32.gmra.mxu0 %v889
        %v1026 = vpop.f32.mrf.mxu0
        %v1027 = vadd.f32 %v837, %v1026
        %1028 = vdwg.mxu0
        %1029 = vmatpush.msra.mxu0 0.0
        %1030 = vmatpush.msra.mxu0 0.0
        %1031 = vmatpush.msra.mxu0 0.0
        %1032 = vmatpush.msra.mxu0 0.0
        %1033 = vmatpush.msra.mxu0 0.0
        %1034 = vmatpush.msra.mxu0 0.0
        %1035 = vmatpush.msra.mxu0 0.0
        %1036 = vmatpush.msra.mxu0 0.0
        %1037 = vmatpush.msra.mxu0 0.0
        %1038 = vmatpush.msra.mxu0 0.0
        %1039 = vmatpush.msra.mxu0 0.0
        %1040 = vmatpush.msra.mxu0 0.0
        %1041 = vmatpush.msra.mxu0 %v660
        %1042 = vmatpush.msra.mxu0 %v652
        %1043 = vmatpush.msra.mxu0 %v644
        %1044 = vmatpush.msra.mxu0 %v636
        %1045 = vmatmul.f32.gmra.mxu0 %v886
        %v1046 = vpop.f32.mrf.mxu0
        %v1047 = vadd.f32 %v857, %v1046
        %1048 = vmatmul.f32.gmra.mxu0 %v889
        %v1049 = vpop.f32.mrf.mxu0
        %v1050 = vadd.f32 %v860, %v1049
        %1051 = vdwg.mxu0
        %1052 = vmatpush.msra.mxu0 0.0
        %1053 = vmatpush.msra.mxu0 0.0
        %1054 = vmatpush.msra.mxu0 0.0
        %1055 = vmatpush.msra.mxu0 0.0
        %1056 = vmatpush.msra.mxu0 0.0
        %1057 = vmatpush.msra.mxu0 0.0
        %1058 = vmatpush.msra.mxu0 0.0
        %1059 = vmatpush.msra.mxu0 0.0
        %1060 = vmatpush.msra.mxu0 0.0
        %1061 = vmatpush.msra.mxu0 0.0
        %1062 = vmatpush.msra.mxu0 0.0
        %1063 = vmatpush.msra.mxu0 0.0
        %1064 = vmatpush.msra.mxu0 %v661
        %1065 = vmatpush.msra.mxu0 %v653
        %1066 = vmatpush.msra.mxu0 %v645
        %1067 = vmatpush.msra.mxu0 %v637
        %1068 = vmatmul.f32.gmra.mxu0 %v886
        %v1069 = vpop.f32.mrf.mxu0
        %v1070 = vadd.f32 %v880, %v1069
        %1071 = vmatmul.f32.gmra.mxu0 %v889
        %v1072 = vpop.f32.mrf.mxu0
        %v1073 = vadd.f32 %v883, %v1072
        %1074 = vdwg.mxu0
        %v1075 = vld [vmem:[%s5] sm:$0xff]
        %v1077 = vperm.slane %v1075, 0
        %v1078 = vperm.slane %v1075, 1
        %v1079 = vperm.slane %v1075, 2
        %v1080 = vperm.slane %v1075, 3
        %v1081 = vperm.slane %v1075, 4
        %v1082 = vperm.slane %v1075, 5
        %v1083 = vperm.slane %v1075, 6
        %v1084 = vperm.slane %v1075, 7
        %v1093 = vadd.f32 %v909, %v1077
        %v1094 = vadd.f32 %v932, %v1078
        %v1095 = vadd.f32 %v955, %v1079
        %v1096 = vadd.f32 %v978, %v1080
        %v1097 = vadd.f32 %v1001, %v1081
        %v1098 = vadd.f32 %v1024, %v1082
        %v1099 = vadd.f32 %v1047, %v1083
        %v1100 = vadd.f32 %v1070, %v1084
        %v1101 = vadd.f32 %v912, %v1077
        %v1102 = vadd.f32 %v935, %v1078
        %v1103 = vadd.f32 %v958, %v1079
        %v1104 = vadd.f32 %v981, %v1080
        %v1105 = vadd.f32 %v1004, %v1081
        %v1106 = vadd.f32 %v1027, %v1082
        %v1107 = vadd.f32 %v1050, %v1083
        %v1108 = vadd.f32 %v1073, %v1084
        %v1109 = vld [vmem:[%s6] sm:$0xff]
        %1111 = vset.pattern.permute.xlu0 0
        %1112 = vperm.xlu0 %1111, %v568
        %v1113 = vpop.permute.xlu0 %1112
        %v1115 = vperm.slane %v1113, 0
        %v1116 = vmul.f32 %v1115, %v1109
        %v1118 = vperm.slane %v1116, 0
        %v1119 = vperm.slane %v1116, 1
        %v1120 = vperm.slane %v1116, 2
        %v1121 = vperm.slane %v1116, 3
        %v1122 = vperm.slane %v1116, 4
        %v1123 = vperm.slane %v1116, 5
        %v1124 = vperm.slane %v1116, 6
        %v1125 = vperm.slane %v1116, 7
        %v1134 = vadd.f32 %v1093, %v1118
        %v1135 = vadd.f32 %v1094, %v1119
        %v1136 = vadd.f32 %v1095, %v1120
        %v1137 = vadd.f32 %v1096, %v1121
        %v1138 = vadd.f32 %v1097, %v1122
        %v1139 = vadd.f32 %v1098, %v1123
        %v1140 = vadd.f32 %v1099, %v1124
        %v1141 = vadd.f32 %v1100, %v1125
        %v1142 = vadd.f32 %v1101, %v1118
        %v1143 = vadd.f32 %v1102, %v1119
        %v1144 = vadd.f32 %v1103, %v1120
        %v1145 = vadd.f32 %v1104, %v1121
        %v1146 = vadd.f32 %v1105, %v1122
        %v1147 = vadd.f32 %v1106, %v1123
        %v1148 = vadd.f32 %v1107, %v1124
        %v1149 = vadd.f32 %v1108, %v1125
        %v1150 = vld [vmem:[%s7] sm:$0xff]
        %v1151 = vld [vmem:[%s7 + $0x8] sm:$0xff]
        %v1152 = vld [vmem:[%s7 + $0x10] sm:$0xff]
        %v1153 = vld [vmem:[%s7 + $0x18] sm:$0xff]
        %v1154 = vld [vmem:[%s7 + $0x20] sm:$0xff]
        %v1155 = vld [vmem:[%s7 + $0x28] sm:$0xff]
        %v1156 = vld [vmem:[%s7 + $0x30] sm:$0xff]
        %v1157 = vld [vmem:[%s7 + $0x38] sm:$0xff]
        %v1158 = vld [vmem:[%s7 + $0x40] sm:$0xff]
        %v1159 = vld [vmem:[%s7 + $0x48] sm:$0xff]
        %v1160 = vld [vmem:[%s7 + $0x50] sm:$0xff]
        %v1161 = vld [vmem:[%s7 + $0x58] sm:$0xff]
        %v1162 = vld [vmem:[%s7 + $0x60] sm:$0xff]
        %v1163 = vld [vmem:[%s7 + $0x68] sm:$0xff]
        %v1164 = vld [vmem:[%s7 + $0x70] sm:$0xff]
        %v1165 = vld [vmem:[%s7 + $0x78] sm:$0xff]
        %v1166 = vmul.f32 %v1134, %v1150
        %v1167 = vmul.f32 %v1135, %v1151
        %v1168 = vmul.f32 %v1136, %v1152
        %v1169 = vmul.f32 %v1137, %v1153
        %v1170 = vmul.f32 %v1138, %v1154
        %v1171 = vmul.f32 %v1139, %v1155
        %v1172 = vmul.f32 %v1140, %v1156
        %v1173 = vmul.f32 %v1141, %v1157
        %v1174 = vmul.f32 %v1142, %v1158
        %v1175 = vmul.f32 %v1143, %v1159
        %v1176 = vmul.f32 %v1144, %v1160
        %v1177 = vmul.f32 %v1145, %v1161
        %v1178 = vmul.f32 %v1146, %v1162
        %v1179 = vmul.f32 %v1147, %v1163
        %v1180 = vmul.f32 %v1148, %v1164
        %v1181 = vmul.f32 %v1149, %v1165
        %v1182 = vld [vmem:[%s8] sm:$0xff]
        %v1183 = vld [vmem:[%s8 + $0x8] sm:$0xff]
        %v1184 = vld [vmem:[%s8 + $0x10] sm:$0xff]
        %v1185 = vld [vmem:[%s8 + $0x18] sm:$0xff]
        %v1186 = vld [vmem:[%s8 + $0x20] sm:$0xff]
        %v1187 = vld [vmem:[%s8 + $0x28] sm:$0xff]
        %v1188 = vld [vmem:[%s8 + $0x30] sm:$0xff]
        %v1189 = vld [vmem:[%s8 + $0x38] sm:$0xff]
        %v1190 = vld [vmem:[%s8 + $0x40] sm:$0xff]
        %v1191 = vld [vmem:[%s8 + $0x48] sm:$0xff]
        %v1192 = vld [vmem:[%s8 + $0x50] sm:$0xff]
        %v1193 = vld [vmem:[%s8 + $0x58] sm:$0xff]
        %v1194 = vld [vmem:[%s8 + $0x60] sm:$0xff]
        %v1195 = vld [vmem:[%s8 + $0x68] sm:$0xff]
        %v1196 = vld [vmem:[%s8 + $0x70] sm:$0xff]
        %v1197 = vld [vmem:[%s8 + $0x78] sm:$0xff]
        %v1198 = vld [vmem:[%s8 + $0x80] sm:$0xff]
        %v1199 = vld [vmem:[%s8 + $0x88] sm:$0xff]
        %v1200 = vld [vmem:[%s8 + $0x90] sm:$0xff]
        %v1201 = vld [vmem:[%s8 + $0x98] sm:$0xff]
        %v1202 = vld [vmem:[%s8 + $0xa0] sm:$0xff]
        %v1203 = vld [vmem:[%s8 + $0xa8] sm:$0xff]
        %v1204 = vld [vmem:[%s8 + $0xb0] sm:$0xff]
        %v1205 = vld [vmem:[%s8 + $0xb8] sm:$0xff]
        %v1206 = vld [vmem:[%s8 + $0xc0] sm:$0xff]
        %v1207 = vld [vmem:[%s8 + $0xc8] sm:$0xff]
        %v1208 = vld [vmem:[%s8 + $0xd0] sm:$0xff]
        %v1209 = vld [vmem:[%s8 + $0xd8] sm:$0xff]
        %v1210 = vld [vmem:[%s8 + $0xe0] sm:$0xff]
        %v1211 = vld [vmem:[%s8 + $0xe8] sm:$0xff]
        %v1212 = vld [vmem:[%s8 + $0xf0] sm:$0xff]
        %v1213 = vld [vmem:[%s8 + $0xf8] sm:$0xff]
        %v1214 = vld [vmem:[%s8 + $0x100] sm:$0xff]
        %v1215 = vld [vmem:[%s8 + $0x108] sm:$0xff]
        %v1216 = vld [vmem:[%s8 + $0x110] sm:$0xff]
        %v1217 = vld [vmem:[%s8 + $0x118] sm:$0xff]
        %v1218 = vld [vmem:[%s8 + $0x120] sm:$0xff]
        %v1219 = vld [vmem:[%s8 + $0x128] sm:$0xff]
        %v1220 = vld [vmem:[%s8 + $0x130] sm:$0xff]
        %v1221 = vld [vmem:[%s8 + $0x138] sm:$0xff]
        %v1222 = vld [vmem:[%s8 + $0x140] sm:$0xff]
        %v1223 = vld [vmem:[%s8 + $0x148] sm:$0xff]
        %v1224 = vld [vmem:[%s8 + $0x150] sm:$0xff]
        %v1225 = vld [vmem:[%s8 + $0x158] sm:$0xff]
        %v1226 = vld [vmem:[%s8 + $0x160] sm:$0xff]
        %v1227 = vld [vmem:[%s8 + $0x168] sm:$0xff]
        %v1228 = vld [vmem:[%s8 + $0x170] sm:$0xff]
        %v1229 = vld [vmem:[%s8 + $0x178] sm:$0xff]
        %v1230 = vld [vmem:[%s8 + $0x180] sm:$0xff]
        %v1231 = vld [vmem:[%s8 + $0x188] sm:$0xff]
        %v1232 = vld [vmem:[%s8 + $0x190] sm:$0xff]
        %v1233 = vld [vmem:[%s8 + $0x198] sm:$0xff]
        %v1234 = vld [vmem:[%s8 + $0x1a0] sm:$0xff]
        %v1235 = vld [vmem:[%s8 + $0x1a8] sm:$0xff]
        %v1236 = vld [vmem:[%s8 + $0x1b0] sm:$0xff]
        %v1237 = vld [vmem:[%s8 + $0x1b8] sm:$0xff]
        %v1238 = vld [vmem:[%s8 + $0x1c0] sm:$0xff]
        %v1239 = vld [vmem:[%s8 + $0x1c8] sm:$0xff]
        %v1240 = vld [vmem:[%s8 + $0x1d0] sm:$0xff]
        %v1241 = vld [vmem:[%s8 + $0x1d8] sm:$0xff]
        %v1242 = vld [vmem:[%s8 + $0x1e0] sm:$0xff]
        %v1243 = vld [vmem:[%s8 + $0x1e8] sm:$0xff]
        %v1244 = vld [vmem:[%s8 + $0x1f0] sm:$0xff]
        %v1245 = vld [vmem:[%s8 + $0x1f8] sm:$0xff]
        %v1246 = vld [vmem:[%s8 + $0x200] sm:$0xff]
        %v1247 = vld [vmem:[%s8 + $0x208] sm:$0xff]
        %v1248 = vld [vmem:[%s8 + $0x210] sm:$0xff]
        %v1249 = vld [vmem:[%s8 + $0x218] sm:$0xff]
        %v1250 = vld [vmem:[%s8 + $0x220] sm:$0xff]
        %v1251 = vld [vmem:[%s8 + $0x228] sm:$0xff]
        %v1252 = vld [vmem:[%s8 + $0x230] sm:$0xff]
        %v1253 = vld [vmem:[%s8 + $0x238] sm:$0xff]
        %v1254 = vld [vmem:[%s8 + $0x240] sm:$0xff]
        %v1255 = vld [vmem:[%s8 + $0x248] sm:$0xff]
        %v1256 = vld [vmem:[%s8 + $0x250] sm:$0xff]
        %v1257 = vld [vmem:[%s8 + $0x258] sm:$0xff]
        %v1258 = vld [vmem:[%s8 + $0x260] sm:$0xff]
        %v1259 = vld [vmem:[%s8 + $0x268] sm:$0xff]
        %v1260 = vld [vmem:[%s8 + $0x270] sm:$0xff]
        %v1261 = vld [vmem:[%s8 + $0x278] sm:$0xff]
        %v1262 = vld [vmem:[%s8 + $0x280] sm:$0xff]
        %v1263 = vld [vmem:[%s8 + $0x288] sm:$0xff]
        %v1264 = vld [vmem:[%s8 + $0x290] sm:$0xff]
        %v1265 = vld [vmem:[%s8 + $0x298] sm:$0xff]
        %v1266 = vld [vmem:[%s8 + $0x2a0] sm:$0xff]
        %v1267 = vld [vmem:[%s8 + $0x2a8] sm:$0xff]
        %v1268 = vld [vmem:[%s8 + $0x2b0] sm:$0xff]
        %v1269 = vld [vmem:[%s8 + $0x2b8] sm:$0xff]
        %v1270 = vld [vmem:[%s8 + $0x2c0] sm:$0xff]
        %v1271 = vld [vmem:[%s8 + $0x2c8] sm:$0xff]
        %v1272 = vld [vmem:[%s8 + $0x2d0] sm:$0xff]
        %v1273 = vld [vmem:[%s8 + $0x2d8] sm:$0xff]
        %v1274 = vld [vmem:[%s8 + $0x2e0] sm:$0xff]
        %v1275 = vld [vmem:[%s8 + $0x2e8] sm:$0xff]
        %v1276 = vld [vmem:[%s8 + $0x2f0] sm:$0xff]
        %v1277 = vld [vmem:[%s8 + $0x2f8] sm:$0xff]
        %v1278 = vld [vmem:[%s8 + $0x300] sm:$0xff]
        %v1279 = vld [vmem:[%s8 + $0x308] sm:$0xff]
        %v1280 = vld [vmem:[%s8 + $0x310] sm:$0xff]
        %v1281 = vld [vmem:[%s8 + $0x318] sm:$0xff]
        %v1282 = vld [vmem:[%s8 + $0x320] sm:$0xff]
        %v1283 = vld [vmem:[%s8 + $0x328] sm:$0xff]
        %v1284 = vld [vmem:[%s8 + $0x330] sm:$0xff]
        %v1285 = vld [vmem:[%s8 + $0x338] sm:$0xff]
        %v1286 = vld [vmem:[%s8 + $0x340] sm:$0xff]
        %v1287 = vld [vmem:[%s8 + $0x348] sm:$0xff]
        %v1288 = vld [vmem:[%s8 + $0x350] sm:$0xff]
        %v1289 = vld [vmem:[%s8 + $0x358] sm:$0xff]
        %v1290 = vld [vmem:[%s8 + $0x360] sm:$0xff]
        %v1291 = vld [vmem:[%s8 + $0x368] sm:$0xff]
        %v1292 = vld [vmem:[%s8 + $0x370] sm:$0xff]
        %v1293 = vld [vmem:[%s8 + $0x378] sm:$0xff]
        %v1294 = vld [vmem:[%s8 + $0x380] sm:$0xff]
        %v1295 = vld [vmem:[%s8 + $0x388] sm:$0xff]
        %v1296 = vld [vmem:[%s8 + $0x390] sm:$0xff]
        %v1297 = vld [vmem:[%s8 + $0x398] sm:$0xff]
        %v1298 = vld [vmem:[%s8 + $0x3a0] sm:$0xff]
        %v1299 = vld [vmem:[%s8 + $0x3a8] sm:$0xff]
        %v1300 = vld [vmem:[%s8 + $0x3b0] sm:$0xff]
        %v1301 = vld [vmem:[%s8 + $0x3b8] sm:$0xff]
        %v1302 = vld [vmem:[%s8 + $0x3c0] sm:$0xff]
        %v1303 = vld [vmem:[%s8 + $0x3c8] sm:$0xff]
        %v1304 = vld [vmem:[%s8 + $0x3d0] sm:$0xff]
        %v1305 = vld [vmem:[%s8 + $0x3d8] sm:$0xff]
        %v1306 = vld [vmem:[%s8 + $0x3e0] sm:$0xff]
        %v1307 = vld [vmem:[%s8 + $0x3e8] sm:$0xff]
        %v1308 = vld [vmem:[%s8 + $0x3f0] sm:$0xff]
        %v1309 = vld [vmem:[%s8 + $0x3f8] sm:$0xff]
        %1310 = vmatpush.msra.mxu0 %v1197
        %1311 = vmatpush.msra.mxu0 %v1196
        %1312 = vmatpush.msra.mxu0 %v1195
        %1313 = vmatpush.msra.mxu0 %v1194
        %1314 = vmatpush.msra.mxu0 %v1193
        %1315 = vmatpush.msra.mxu0 %v1192
        %1316 = vmatpush.msra.mxu0 %v1191
        %1317 = vmatpush.msra.mxu0 %v1190
        %1318 = vmatpush.msra.mxu0 %v1189
        %1319 = vmatpush.msra.mxu0 %v1188
        %1320 = vmatpush.msra.mxu0 %v1187
        %1321 = vmatpush.msra.mxu0 %v1186
        %1322 = vmatpush.msra.mxu0 %v1185
        %1323 = vmatpush.msra.mxu0 %v1184
        %1324 = vmatpush.msra.mxu0 %v1183
        %1325 = vmatpush.msra.mxu0 %v1182
        %1326 = vmatmul.f32.gmra.mxu0 %v1166
        %v1327 = vpop.f32.mrf.mxu0
        %v1328 = vadd.f32 0.0, %v1327
        %1329 = vmatmul.f32.gmra.mxu0 %v1174
        %v1330 = vpop.f32.mrf.mxu0
        %v1331 = vadd.f32 0.0, %v1330
        %1332 = vdwg.mxu0
        %1333 = vmatpush.msra.mxu0 %v1213
        %1334 = vmatpush.msra.mxu0 %v1212
        %1335 = vmatpush.msra.mxu0 %v1211
        %1336 = vmatpush.msra.mxu0 %v1210
        %1337 = vmatpush.msra.mxu0 %v1209
        %1338 = vmatpush.msra.mxu0 %v1208
        %1339 = vmatpush.msra.mxu0 %v1207
        %1340 = vmatpush.msra.mxu0 %v1206
        %1341 = vmatpush.msra.mxu0 %v1205
        %1342 = vmatpush.msra.mxu0 %v1204
        %1343 = vmatpush.msra.mxu0 %v1203
        %1344 = vmatpush.msra.mxu0 %v1202
        %1345 = vmatpush.msra.mxu0 %v1201
        %1346 = vmatpush.msra.mxu0 %v1200
        %1347 = vmatpush.msra.mxu0 %v1199
        %1348 = vmatpush.msra.mxu0 %v1198
        %1349 = vmatmul.f32.gmra.mxu0 %v1167
        %v1350 = vpop.f32.mrf.mxu0
        %v1351 = vadd.f32 %v1328, %v1350
        %1352 = vmatmul.f32.gmra.mxu0 %v1175
        %v1353 = vpop.f32.mrf.mxu0
        %v1354 = vadd.f32 %v1331, %v1353
        %1355 = vdwg.mxu0
        %1356 = vmatpush.msra.mxu0 %v1229
        %1357 = vmatpush.msra.mxu0 %v1228
        %1358 = vmatpush.msra.mxu0 %v1227
        %1359 = vmatpush.msra.mxu0 %v1226
        %1360 = vmatpush.msra.mxu0 %v1225
        %1361 = vmatpush.msra.mxu0 %v1224
        %1362 = vmatpush.msra.mxu0 %v1223
        %1363 = vmatpush.msra.mxu0 %v1222
        %1364 = vmatpush.msra.mxu0 %v1221
        %1365 = vmatpush.msra.mxu0 %v1220
        %1366 = vmatpush.msra.mxu0 %v1219
        %1367 = vmatpush.msra.mxu0 %v1218
        %1368 = vmatpush.msra.mxu0 %v1217
        %1369 = vmatpush.msra.mxu0 %v1216
        %1370 = vmatpush.msra.mxu0 %v1215
        %1371 = vmatpush.msra.mxu0 %v1214
        %1372 = vmatmul.f32.gmra.mxu0 %v1168
        %v1373 = vpop.f32.mrf.mxu0
        %v1374 = vadd.f32 %v1351, %v1373
        %1375 = vmatmul.f32.gmra.mxu0 %v1176
        %v1376 = vpop.f32.mrf.mxu0
        %v1377 = vadd.f32 %v1354, %v1376
        %1378 = vdwg.mxu0
        %1379 = vmatpush.msra.mxu0 %v1245
        %1380 = vmatpush.msra.mxu0 %v1244
        %1381 = vmatpush.msra.mxu0 %v1243
        %1382 = vmatpush.msra.mxu0 %v1242
        %1383 = vmatpush.msra.mxu0 %v1241
        %1384 = vmatpush.msra.mxu0 %v1240
        %1385 = vmatpush.msra.mxu0 %v1239
        %1386 = vmatpush.msra.mxu0 %v1238
        %1387 = vmatpush.msra.mxu0 %v1237
        %1388 = vmatpush.msra.mxu0 %v1236
        %1389 = vmatpush.msra.mxu0 %v1235
        %1390 = vmatpush.msra.mxu0 %v1234
        %1391 = vmatpush.msra.mxu0 %v1233
        %1392 = vmatpush.msra.mxu0 %v1232
        %1393 = vmatpush.msra.mxu0 %v1231
        %1394 = vmatpush.msra.mxu0 %v1230
        %1395 = vmatmul.f32.gmra.mxu0 %v1169
        %v1396 = vpop.f32.mrf.mxu0
        %v1397 = vadd.f32 %v1374, %v1396
        %1398 = vmatmul.f32.gmra.mxu0 %v1177
        %v1399 = vpop.f32.mrf.mxu0
        %v1400 = vadd.f32 %v1377, %v1399
        %1401 = vdwg.mxu0
        %1402 = vmatpush.msra.mxu0 %v1261
        %1403 = vmatpush.msra.mxu0 %v1260
        %1404 = vmatpush.msra.mxu0 %v1259
        %1405 = vmatpush.msra.mxu0 %v1258
        %1406 = vmatpush.msra.mxu0 %v1257
        %1407 = vmatpush.msra.mxu0 %v1256
        %1408 = vmatpush.msra.mxu0 %v1255
        %1409 = vmatpush.msra.mxu0 %v1254
        %1410 = vmatpush.msra.mxu0 %v1253
        %1411 = vmatpush.msra.mxu0 %v1252
        %1412 = vmatpush.msra.mxu0 %v1251
        %1413 = vmatpush.msra.mxu0 %v1250
        %1414 = vmatpush.msra.mxu0 %v1249
        %1415 = vmatpush.msra.mxu0 %v1248
        %1416 = vmatpush.msra.mxu0 %v1247
        %1417 = vmatpush.msra.mxu0 %v1246
        %1418 = vmatmul.f32.gmra.mxu0 %v1170
        %v1419 = vpop.f32.mrf.mxu0
        %v1420 = vadd.f32 %v1397, %v1419
        %1421 = vmatmul.f32.gmra.mxu0 %v1178
        %v1422 = vpop.f32.mrf.mxu0
        %v1423 = vadd.f32 %v1400, %v1422
        %1424 = vdwg.mxu0
        %1425 = vmatpush.msra.mxu0 %v1277
        %1426 = vmatpush.msra.mxu0 %v1276
        %1427 = vmatpush.msra.mxu0 %v1275
        %1428 = vmatpush.msra.mxu0 %v1274
        %1429 = vmatpush.msra.mxu0 %v1273
        %1430 = vmatpush.msra.mxu0 %v1272
        %1431 = vmatpush.msra.mxu0 %v1271
        %1432 = vmatpush.msra.mxu0 %v1270
        %1433 = vmatpush.msra.mxu0 %v1269
        %1434 = vmatpush.msra.mxu0 %v1268
        %1435 = vmatpush.msra.mxu0 %v1267
        %1436 = vmatpush.msra.mxu0 %v1266
        %1437 = vmatpush.msra.mxu0 %v1265
        %1438 = vmatpush.msra.mxu0 %v1264
        %1439 = vmatpush.msra.mxu0 %v1263
        %1440 = vmatpush.msra.mxu0 %v1262
        %1441 = vmatmul.f32.gmra.mxu0 %v1171
        %v1442 = vpop.f32.mrf.mxu0
        %v1443 = vadd.f32 %v1420, %v1442
        %1444 = vmatmul.f32.gmra.mxu0 %v1179
        %v1445 = vpop.f32.mrf.mxu0
        %v1446 = vadd.f32 %v1423, %v1445
        %1447 = vdwg.mxu0
        %1448 = vmatpush.msra.mxu0 %v1293
        %1449 = vmatpush.msra.mxu0 %v1292
        %1450 = vmatpush.msra.mxu0 %v1291
        %1451 = vmatpush.msra.mxu0 %v1290
        %1452 = vmatpush.msra.mxu0 %v1289
        %1453 = vmatpush.msra.mxu0 %v1288
        %1454 = vmatpush.msra.mxu0 %v1287
        %1455 = vmatpush.msra.mxu0 %v1286
        %1456 = vmatpush.msra.mxu0 %v1285
        %1457 = vmatpush.msra.mxu0 %v1284
        %1458 = vmatpush.msra.mxu0 %v1283
        %1459 = vmatpush.msra.mxu0 %v1282
        %1460 = vmatpush.msra.mxu0 %v1281
        %1461 = vmatpush.msra.mxu0 %v1280
        %1462 = vmatpush.msra.mxu0 %v1279
        %1463 = vmatpush.msra.mxu0 %v1278
        %1464 = vmatmul.f32.gmra.mxu0 %v1172
        %v1465 = vpop.f32.mrf.mxu0
        %v1466 = vadd.f32 %v1443, %v1465
        %1467 = vmatmul.f32.gmra.mxu0 %v1180
        %v1468 = vpop.f32.mrf.mxu0
        %v1469 = vadd.f32 %v1446, %v1468
        %1470 = vdwg.mxu0
        %1471 = vmatpush.msra.mxu0 %v1309
        %1472 = vmatpush.msra.mxu0 %v1308
        %1473 = vmatpush.msra.mxu0 %v1307
        %1474 = vmatpush.msra.mxu0 %v1306
        %1475 = vmatpush.msra.mxu0 %v1305
        %1476 = vmatpush.msra.mxu0 %v1304
        %1477 = vmatpush.msra.mxu0 %v1303
        %1478 = vmatpush.msra.mxu0 %v1302
        %1479 = vmatpush.msra.mxu0 %v1301
        %1480 = vmatpush.msra.mxu0 %v1300
        %1481 = vmatpush.msra.mxu0 %v1299
        %1482 = vmatpush.msra.mxu0 %v1298
        %1483 = vmatpush.msra.mxu0 %v1297
        %1484 = vmatpush.msra.mxu0 %v1296
        %1485 = vmatpush.msra.mxu0 %v1295
        %1486 = vmatpush.msra.mxu0 %v1294
        %1487 = vmatmul.f32.gmra.mxu0 %v1173
        %v1488 = vpop.f32.mrf.mxu0
        %v1489 = vadd.f32 %v1466, %v1488
        %1490 = vmatmul.f32.gmra.mxu0 %v1181
        %v1491 = vpop.f32.mrf.mxu0
        %v1492 = vadd.f32 %v1469, %v1491
        %1493 = vdwg.mxu0
        %v1494 = vld [vmem:[%s9] sm:$0xff]
        %v1495 = vld [vmem:[%s9 + $0x8] sm:$0xff]
        %v1496 = vld [vmem:[%s9 + $0x10] sm:$0xff]
        %v1497 = vld [vmem:[%s9 + $0x18] sm:$0xff]
        %v1498 = vld [vmem:[%s10] sm:$0x1]
        %v1500 = vperm.slane %v1498, 0
        %v1503 = vsel %vm694, %v562, 0
        %v1506 = vsel %vm694, %v563, 0
        %v1509 = vsel %vm694, %v564, 0
        %v1512 = vsel %vm694, %v565, 0
        %1514 = vmatpush.msra.mxu0 0.0
        %1515 = vmatpush.msra.mxu0 0.0
        %1516 = vmatpush.msra.mxu0 0.0
        %1517 = vmatpush.msra.mxu0 0.0
        %1518 = vmatpush.msra.mxu0 0.0
        %1519 = vmatpush.msra.mxu0 0.0
        %1520 = vmatpush.msra.mxu0 0.0
        %1521 = vmatpush.msra.mxu0 0.0
        %1522 = vmatpush.msra.mxu0 0.0
        %1523 = vmatpush.msra.mxu0 0.0
        %1524 = vmatpush.msra.mxu0 0.0
        %1525 = vmatpush.msra.mxu0 0.0
        %1526 = vmatpush.msra.mxu0 %v1497
        %1527 = vmatpush.msra.mxu0 %v1496
        %1528 = vmatpush.msra.mxu0 %v1495
        %1529 = vmatpush.msra.mxu0 %v1494
        %1530 = vmatmul.f32.gmra.mxu0 %v1503
        %v1531 = vpop.f32.mrf.mxu0
        %v1532 = vadd.f32 %v1500, %v1531
        %1533 = vmatmul.f32.gmra.mxu0 %v1506
        %v1534 = vpop.f32.mrf.mxu0
        %v1535 = vadd.f32 %v1500, %v1534
        %1536 = vmatmul.f32.gmra.mxu0 %v1509
        %v1537 = vpop.f32.mrf.mxu0
        %v1538 = vadd.f32 %v1500, %v1537
        %1539 = vmatmul.f32.gmra.mxu0 %v1512
        %v1540 = vpop.f32.mrf.mxu0
        %v1541 = vadd.f32 %v1500, %v1540
        %1542 = vdwg.mxu0
        %v1543 = vld [vmem:[%s11] sm:$0xff]
        %v1544 = vld [vmem:[%s11 + $0x8] sm:$0xff]
        %v1545 = vld [vmem:[%s11 + $0x10] sm:$0xff]
        %v1546 = vld [vmem:[%s11 + $0x18] sm:$0xff]
        %v1547 = vmul.f32 %v1532, %v1543
        %v1548 = vmul.f32 %v1535, %v1544
        %v1549 = vmul.f32 %v1538, %v1545
        %v1550 = vmul.f32 %v1541, %v1546
        %v1552 = vsel %vm694, %v1489, 0
        %v1555 = vsel %vm694, %v1492, 0
        %v1558 = vsel %vm694, %v1547, 0
        %v1561 = vsel %vm694, %v1548, 0
        %v1564 = vsel %vm694, %v1549, 0
        %v1567 = vsel %vm694, %v1550, 0
        %1569 = vmatpush.xpose.msra.mxu0 0.0
        %1570 = vmatpush.xpose.msra.mxu0 0.0
        %1571 = vmatpush.xpose.msra.mxu0 0.0
        %1572 = vmatpush.xpose.msra.mxu0 0.0
        %1573 = vmatpush.xpose.msra.mxu0 0.0
        %1574 = vmatpush.xpose.msra.mxu0 0.0
        %1575 = vmatpush.xpose.msra.mxu0 0.0
        %1576 = vmatpush.xpose.msra.mxu0 0.0
        %1577 = vmatpush.xpose.msra.mxu0 0.0
        %1578 = vmatpush.xpose.msra.mxu0 0.0
        %1579 = vmatpush.xpose.msra.mxu0 0.0
        %1580 = vmatpush.xpose.msra.mxu0 0.0
        %1581 = vmatpush.xpose.msra.mxu0 %v1567
        %1582 = vmatpush.xpose.msra.mxu0 %v1564
        %1583 = vmatpush.xpose.msra.mxu0 %v1561
        %1584 = vmatpush.xpose.msra.mxu0 %v1558
        %1585 = vmatmul.f32.gmra.mxu0 %v1552
        %v1586 = vpop.f32.mrf.mxu0
        %v1587 = vadd.f32 0.0, %v1586
        %1588 = vmatmul.f32.gmra.mxu0 %v1555
        %v1589 = vpop.f32.mrf.mxu0
        %v1590 = vadd.f32 0.0, %v1589
        %1591 = vdwg.mxu0
        %v1593 = vperm.slane %v567, 0
        %v1595 = vmul.f32 %v1587, %v1593
        %v1596 = vmul.f32 %v1590, %v1593
        %v1597 = vld [vmem:[%s12] sm:$0xff]
        %v1598 = vld [vmem:[%s12 + $0x8] sm:$0xff]
        %v1599 = vld [vmem:[%s12 + $0x10] sm:$0xff]
        %v1600 = vld [vmem:[%s12 + $0x18] sm:$0xff]
        %v1602 = vsel %vm694, %v1595, 0
        %v1605 = vsel %vm694, %v1596, 0
        %1607 = vmatpush.msra.mxu0 0.0
        %1608 = vmatpush.msra.mxu0 0.0
        %1609 = vmatpush.msra.mxu0 0.0
        %1610 = vmatpush.msra.mxu0 0.0
        %1611 = vmatpush.msra.mxu0 0.0
        %1612 = vmatpush.msra.mxu0 0.0
        %1613 = vmatpush.msra.mxu0 0.0
        %1614 = vmatpush.msra.mxu0 0.0
        %1615 = vmatpush.msra.mxu0 0.0
        %1616 = vmatpush.msra.mxu0 0.0
        %1617 = vmatpush.msra.mxu0 0.0
        %1618 = vmatpush.msra.mxu0 0.0
        %1619 = vmatpush.msra.mxu0 %v1600
        %1620 = vmatpush.msra.mxu0 %v1599
        %1621 = vmatpush.msra.mxu0 %v1598
        %1622 = vmatpush.msra.mxu0 %v1597
        %1623 = vmatmul.f32.gmra.mxu0 %v1602
        %v1624 = vpop.f32.mrf.mxu0
        %v1625 = vadd.f32 0.0, %v1624
        %1626 = vmatmul.f32.gmra.mxu0 %v1605
        %v1627 = vpop.f32.mrf.mxu0
        %v1628 = vadd.f32 0.0, %v1627
        %1629 = vdwg.mxu0
        %v1630 = vmul.f32 %v1625, %v626
        %v1631 = vmul.f32 %v1628, %v626
        %v1632 = vld [vmem:[%s14] sm:$0x1]
        %v1634 = vperm.slane %v1632, 0
        %v1636 = vmul.f32 %v1630, %v1634
        %v1637 = vmul.f32 %v1631, %v1634
        %v1638 = vld [vmem:[%s15] sm:$0x1]
        %v1640 = vperm.slane %v1638, 0
        %v1642 = vadd.f32 %v1636, %v1640
        %v1643 = vadd.f32 %v1637, %v1640
        %v1644 = vxor.u32 %v1642, 2147483648
        %v1645 = vxor.u32 %v1643, 2147483648
        %v1646 = vmul.f32 %v1644, 1.442695
        %v1647 = vpow.pop %v1646
        %v1648 = vmul.f32 %v1645, 1.442695
        %v1649 = vpow.pop %v1648
        %v1650 = vadd.f32 %v1647, 1.0
        %v1651 = vadd.f32 %v1649, 1.0
        %v1652 = vrcp.pop %v1650
        %v1653 = vmul.f32 %v1650, %v1652
        %v1654 = vsub.f32 1.0, %v1653
        %v1655 = vmul.f32 %v1652, %v1654
        %v1656 = vadd.f32 %v1652, %v1655
        %vm1657 = vweird.f32 %v1650
        %vm1658 = vweird.f32 %v1652
        %vm1659 = vmor %vm1657, %vm1658
        %v1660 = vsel %vm1659, %v1652, %v1656
        %v1661 = vand.u32 2147483647, %v1650
        %vm1662 = vcmp.eq.f32.partialorder %v1661, 8.507059e+37
        %v1663 = vand.u32 %v1650, 2147483648
        %v1664 = vor.u32 1.1754944e-38, %v1663
        %v1665 = vsel %vm1662, %v1664, %v1660
        %v1666 = vmul.f32 1.0, %v1665
        %v1667 = vrcp.pop %v1651
        %v1668 = vmul.f32 %v1651, %v1667
        %v1669 = vsub.f32 1.0, %v1668
        %v1670 = vmul.f32 %v1667, %v1669
        %v1671 = vadd.f32 %v1667, %v1670
        %vm1672 = vweird.f32 %v1651
        %vm1673 = vweird.f32 %v1667
        %vm1674 = vmor %vm1672, %vm1673
        %v1675 = vsel %vm1674, %v1667, %v1671
        %v1676 = vand.u32 2147483647, %v1651
        %vm1677 = vcmp.eq.f32.partialorder %v1676, 8.507059e+37
        %v1678 = vand.u32 %v1651, 2147483648
        %v1679 = vor.u32 1.1754944e-38, %v1678
        %v1680 = vsel %vm1677, %v1679, %v1675
        %v1681 = vmul.f32 1.0, %v1680
        %vm1682 = vcmp.eq.f32.partialorder %v567, 0.0
        %v1683 = vsel %vm1682, -1e+30, 0.0
        %v1685 = vperm.slane %v593, 0
        %1686 = vset.pattern.permute.xlu0 0
        %1687 = vperm.xlu0 %1686, %v1685
        %v1688 = vpop.permute.xlu0 %1687
        %v1690 = vmul.f32 %v1587, %v1688
        %v1691 = vmul.f32 %v1590, %v1688
        %v1693 = vperm.slane %v1683, 0
        %v1695 = vadd.f32 %v1690, %v1693
        %v1696 = vadd.f32 %v1691, %v1693
        %v1697 = vsel %vm694, %v1695, -inf
        %1698 = vmax.xlane.f32.xlu0 %v1697
        %v1699 = vpop.xlane.xlu0 %1698
        %v1700 = vsel %vm694, %v1696, -inf
        %1701 = vmax.xlane.f32.xlu0 %v1700
        %v1702 = vpop.xlane.xlu0 %1701
        %v1703 = vsub.f32 %v1695, %v1699
        %v1704 = vsub.f32 %v1696, %v1702
        %v1705 = vmul.f32 %v1703, 1.442695
        %v1706 = vpow.pop %v1705
        %v1707 = vmul.f32 %v1704, 1.442695
        %v1708 = vpow.pop %v1707
        %v1710 = vsel %vm694, %v1706, 0
        %v1713 = vsel %vm694, %v1708, 0
        %1715 = vmatpush.msra.mxu0 0.0
        %1716 = vmatpush.msra.mxu0 0.0
        %1717 = vmatpush.msra.mxu0 0.0
        %1718 = vmatpush.msra.mxu0 0.0
        %1719 = vmatpush.msra.mxu0 0.0
        %1720 = vmatpush.msra.mxu0 0.0
        %1721 = vmatpush.msra.mxu0 0.0
        %1722 = vmatpush.msra.mxu0 0.0
        %1723 = vmatpush.msra.mxu0 0.0
        %1724 = vmatpush.msra.mxu0 0.0
        %1725 = vmatpush.msra.mxu0 0.0
        %1726 = vmatpush.msra.mxu0 0.0
        %1727 = vmatpush.msra.mxu0 %v1600
        %1728 = vmatpush.msra.mxu0 %v1599
        %1729 = vmatpush.msra.mxu0 %v1598
        %1730 = vmatpush.msra.mxu0 %v1597
        %1731 = vmatmul.f32.gmra.mxu0 %v1710
        %v1732 = vpop.f32.mrf.mxu0
        %v1733 = vadd.f32 0.0, %v1732
        %1734 = vmatmul.f32.gmra.mxu0 %v1713
        %v1735 = vpop.f32.mrf.mxu0
        %v1736 = vadd.f32 0.0, %v1735
        %1737 = vdwg.mxu0
        %1738 = vrot.lane.b32.xlu0 %v1547, 96
        %v1739 = vpop.permute.xlu0 %1738
        %1740 = vrot.lane.b32.xlu0 %v1548, 96
        %v1741 = vpop.permute.xlu0 %1740
        %1742 = vrot.lane.b32.xlu0 %v1549, 96
        %v1743 = vpop.permute.xlu0 %1742
        %1744 = vrot.lane.b32.xlu0 %v1550, 96
        %v1745 = vpop.permute.xlu0 %1744
        %1750 = vmatpush.msra.mxu0 0.0
        %1751 = vmatpush.msra.mxu0 0.0
        %1752 = vmatpush.msra.mxu0 0.0
        %1753 = vmatpush.msra.mxu0 0.0
        %1754 = vmatpush.msra.mxu0 0.0
        %1755 = vmatpush.msra.mxu0 0.0
        %1756 = vmatpush.msra.mxu0 0.0
        %1757 = vmatpush.msra.mxu0 0.0
        %1758 = vmatpush.msra.mxu0 0.0
        %1759 = vmatpush.msra.mxu0 0.0
        %1760 = vmatpush.msra.mxu0 0.0
        %1761 = vmatpush.msra.mxu0 0.0
        %1762 = vmatpush.msra.mxu0 %v1745
        %1763 = vmatpush.msra.mxu0 %v1743
        %1764 = vmatpush.msra.mxu0 %v1741
        %1765 = vmatpush.msra.mxu0 %v1739
        %1766 = vmatmul.f32.gmra.mxu0 %v1710
        %v1767 = vpop.f32.mrf.mxu0
        %v1768 = vadd.f32 0.0, %v1767
        %1769 = vmatmul.f32.gmra.mxu0 %v1713
        %v1770 = vpop.f32.mrf.mxu0
        %v1771 = vadd.f32 0.0, %v1770
        %1772 = vdwg.mxu0
        %v1773 = vrcp.pop %v1733
        %v1774 = vmul.f32 %v1733, %v1773
        %v1775 = vsub.f32 1.0, %v1774
        %v1776 = vmul.f32 %v1773, %v1775
        %v1777 = vadd.f32 %v1773, %v1776
        %vm1778 = vweird.f32 %v1733
        %vm1779 = vweird.f32 %v1773
        %vm1780 = vmor %vm1778, %vm1779
        %v1781 = vsel %vm1780, %v1773, %v1777
        %v1782 = vand.u32 2147483647, %v1733
        %vm1783 = vcmp.eq.f32.partialorder %v1782, 8.507059e+37
        %v1784 = vand.u32 %v1733, 2147483648
        %v1785 = vor.u32 1.1754944e-38, %v1784
        %v1786 = vsel %vm1783, %v1785, %v1781
        %v1787 = vmul.f32 %v1666, %v1786
        %v1788 = vrcp.pop %v1736
        %v1789 = vmul.f32 %v1736, %v1788
        %v1790 = vsub.f32 1.0, %v1789
        %v1791 = vmul.f32 %v1788, %v1790
        %v1792 = vadd.f32 %v1788, %v1791
        %vm1793 = vweird.f32 %v1736
        %vm1794 = vweird.f32 %v1788
        %vm1795 = vmor %vm1793, %vm1794
        %v1796 = vsel %vm1795, %v1788, %v1792
        %v1797 = vand.u32 2147483647, %v1736
        %vm1798 = vcmp.eq.f32.partialorder %v1797, 8.507059e+37
        %v1799 = vand.u32 %v1736, 2147483648
        %v1800 = vor.u32 1.1754944e-38, %v1799
        %v1801 = vsel %vm1798, %v1800, %v1796
        %v1802 = vmul.f32 %v1681, %v1801
        %v1803 = vld [vmem:[%s13] sm:$0xf]
        %vm1804 = vcmask 31744
        %v1806 = vsel %vm1804, %v1787, 0
        %v1809 = vsel %vm1804, %v1802, 0
        %vm1811 = vcmask 1043456
        %v1813 = vsel %vm1811, %v1803, 0
        %1815 = vmatpush.msra.mxu0 0.0
        %1816 = vmatpush.msra.mxu0 0.0
        %1817 = vmatpush.msra.mxu0 0.0
        %1818 = vmatpush.msra.mxu0 0.0
        %1819 = vmatpush.msra.mxu0 0.0
        %1820 = vmatpush.msra.mxu0 0.0
        %1821 = vmatpush.msra.mxu0 0.0
        %1822 = vmatpush.msra.mxu0 0.0
        %1823 = vmatpush.msra.mxu0 0.0
        %1824 = vmatpush.msra.mxu0 0.0
        %1825 = vmatpush.msra.mxu0 0.0
        %1826 = vmatpush.msra.mxu0 0.0
        %1827 = vmatpush.msra.mxu0 0.0
        %1828 = vmatpush.msra.mxu0 0.0
        %1829 = vmatpush.msra.mxu0 0.0
        %1830 = vmatpush.msra.mxu0 %v1813
        %1831 = vmatmul.f32.gmra.mxu0 %v1806
        %v1832 = vpop.f32.mrf.mxu0
        %v1833 = vadd.f32 0.0, %v1832
        %1834 = vmatmul.f32.gmra.mxu0 %v1809
        %v1835 = vpop.f32.mrf.mxu0
        %v1836 = vadd.f32 0.0, %v1835
        %1837 = vdwg.mxu0
        %v1838 = vmul.f32 %v1768, %v1833
        %v1839 = vmul.f32 %v1771, %v1836
        %1840 = vrot.lane.b32.xlu0 %v1489, 96
        %v1841 = vpop.permute.xlu0 %1840
        %1842 = vrot.lane.b32.xlu0 %v1492, 96
        %v1843 = vpop.permute.xlu0 %1842
        %v1846 = vadd.f32 %v1838, %v1841
        %v1847 = vadd.f32 %v1839, %v1843
        %1848 = vst.msk [vmem:[%s547] sm:$0xff] %vm694, %v1846
        %1849 = vst.msk [vmem:[%s547 + $0x8] sm:$0xff] %vm694, %v1847
        %s1850 = sand.u32 %s394, 1
        %s1851 = scalar_lea.sflag [#allocation3], %s1850
        %s1852 = sand.u32 %s394, 1
        %s1853 = smul.addr %s1852, 16
        %s1854 = scalar_lea.vmem [#allocation2], %s1853
        // Predicated region
        $region85: #{tpu_custom_call.1} parent=83 // pred_check
          %p1855 = pneg %p404
        $region86: #{tpu_custom_call.1} parent=83 // pred_check_branch
          %1857 = sbr.rel (%p1855) target = $region88
        $region87: #{tpu_custom_call.1} parent=83 // pred_region
          %1859 = vsyncadd %s1851, 0
          %s1860 = smul.addr %s30, 2
          %s1861 = smul.addr %s1860, 8
          %s1862 = scalar_lea.hbm %s16, %s1861
          %s1863 = sshll.u32 %s1854, 4
          %s1864 = int_to_ptr.vmem [resolvable:$true] %s1863
          %s1865 = sshll.u32 %s1862, 4
          %s1866 = int_to_ptr.hbm [resolvable:$true] %s1865
          %1871 = dma.vmem_to_hbm [thread:$0]  %s1864, 256, %s1866, %s1851, 128, 128, 8
        $region88: #{tpu_custom_call.1} parent=83 // pred_fallthru
          _
      $region84: #{tpu_custom_call.1} parent=5 // pred_fallthru
        _
      %p1872 = scmp.le.s32.totalorder 2, %s25
      // Predicated region
      $region89: #{tpu_custom_call.1} parent=5 // pred_check
        %p1873 = pneg %p1872
      $region90: #{tpu_custom_call.1} parent=5 // pred_check_branch
        %1875 = sbr.rel (%p1873) target = $region92
      $region91: #{tpu_custom_call.1} parent=5 // pred_region
        %s1876 = ssub.s32 %s25, 2
        // Predicated region
        $region93: #{tpu_custom_call.1} parent=91 // pred_check
          %p1877 = pneg %p410
        $region94: #{tpu_custom_call.1} parent=91 // pred_check_branch
          %1879 = sbr.rel (%p1877) target = $region96
        $region95: #{tpu_custom_call.1} parent=91 // pred_region
          %s1880 = sand.u32 %s395, 1
          %s1881 = scalar_lea.sflag [#allocation3], %s1880
          %s1882 = sand.u32 %s395, 1
          %s1883 = smul.addr %s1882, 16
          %s1884 = scalar_lea.vmem [#allocation2], %s1883
          %1886 = dma.done %s1881, 256
        $region96: #{tpu_custom_call.1} parent=91 // pred_fallthru
          _
      $region92: #{tpu_custom_call.1} parent=5 // pred_fallthru
        _
    $region6: #{tpu_custom_call.1} parent=1 // loop_footer
      %s29 = sadd.s32 1, %s25
    $region7: #{tpu_custom_call.1} parent=1 // loop_footer_branch
      %24 = sbr.rel target = $region3
    $region8: #{tpu_custom_call.1} parent=1 // loop_exit
      _
    %1887 = vsyncpa [#allocation3], 1
    %s1888 = scalar_lea.sflag [#allocation3], 1
    %1889 = vsyncpa %s1888, 1

</llo_original>
